<compile_context>
chip_gen: v5e
topology: v5e:2x2
jax: 0.10.0
libtpu: 0.0.40
codegen_flags: <defaults>
</compile_context>

<pallas_src>
import math
import functools

import jax
import jax.numpy as jnp
from jax import lax
from jax.experimental import pallas as pl
from jax.experimental.pallas import tpu as pltpu

_EPS = 1e-5
_DEC_OUT = 50
_DEC_PAD = 128                      # decoder output padded to a full 128-lane width


# ------------------------------ small helpers ------------------------------

@functools.lru_cache(maxsize=1)
def _vmem_limit_bytes():
    """Generation-aware scoped-VMEM budget (3/4 of physical, capped at 96 MiB)."""
    phys = 64 * 1024 * 1024
    try:
        info = pltpu.get_tpu_info()
        phys = int(getattr(info, "vmem_capacity_bytes", phys)) or phys
    except Exception:
        pass
    return min(phys * 3 // 4, 96 * 1024 * 1024)


def _compiler_params():
    return pltpu.CompilerParams(
        dimension_semantics=("parallel",),       # megacore / 2-TC sharding on v7x
        vmem_limit_bytes=_vmem_limit_bytes(),
    )


def _pick_row_tile(rows, target):
    """Sublane-aligned row tile that divides `rows`, is <= target, and leaves >= 2
    grid steps when rows >= 16 (so v7x's second TensorCore is not idle)."""
    if rows % 8 != 0:
        # TODO(synk): pad rows up to a multiple of 8 instead of one full-array block.
        return rows
    if rows >= 16:
        target = min(target, (rows // 2) // 8 * 8)
    t = max(8, min(target, rows) // 8 * 8)
    while t > 8 and rows % t != 0:
        t -= 8
    return t


def _const_spec(a):
    """Constant-index-map operand: DMA'd once, single-buffered (halves weight VMEM)."""
    return pl.BlockSpec(a.shape, lambda i: (0,) * a.ndim, pipeline_mode=pl.Buffered(1))


def _bytes_accessed(row_inputs, const_inputs, rows, out_cols, out_dtype):
    n = sum(int(a.size) * a.dtype.itemsize for a in (*row_inputs, *const_inputs))
    return n + rows * out_cols * jnp.dtype(out_dtype).itemsize


def _layernorm(x, g, b, eps):
    mean = jnp.mean(x, axis=-1, keepdims=True)
    xc = x - mean
    var = jnp.mean(xc * xc, axis=-1, keepdims=True)
    return xc * lax.rsqrt(var + eps) * g + b


# ------------------------------ Pallas kernels ------------------------------

def _enc_pe_kernel(x_ref, pe_ref, w_ref, b_ref, o_ref, *, scale):
    # y = (x @ W + b) * sqrt(D) + PE   (one grid step = one batch element)
    y = jnp.dot(x_ref[...].astype(jnp.bfloat16), w_ref[...],
                preferred_element_type=jnp.float32)
    o_ref[...] = ((y + b_ref[...]) * scale + pe_ref[...]).astype(o_ref.dtype)


def _attn_ln_kernel(x_ref, wqkv_ref, bqkv_ref, wo_ref, bo_ref, g_ref, be_ref, o_ref,
                    *, num_heads, head_dim, sm_scale, eps):
    # One grid step = one batch element (its S rows are contiguous).  Fuses the QKV
    # projection, all-head attention, out_proj (+bias), residual add and LayerNorm1;
    # qkv and the per-head attention outputs never leave VMEM/vregs.
    # TODO(synk): for long sequences convert to a KV-tiled online-softmax (flash)
    #             pattern instead of materializing the full (S, S) score matrix.
    x = x_ref[...]                                             # (S, D) bf16
    d = num_heads * head_dim
    qkv = jnp.dot(x, wqkv_ref[...], preferred_element_type=jnp.float32) + bqkv_ref[...]
    wo = wo_ref[...]                                           # (D, D) bf16
    z = x.astype(jnp.float32) + bo_ref[...]                    # residual + out_proj bias
    for h in range(num_heads):                                 # unrolled (static, small H)
        lo = h * head_dim
        q = qkv[:, lo:lo + head_dim].astype(jnp.bfloat16)
        k = qkv[:, d + lo:d + lo + head_dim].astype(jnp.bfloat16)
        v = qkv[:, 2 * d + lo:2 * d + lo + head_dim].astype(jnp.bfloat16)
        # scores = q @ k^T without an explicit in-kernel transpose
        s = lax.dot_general(q, k, (((1,), (1,)), ((), ())),
                            preferred_element_type=jnp.float32) * sm_scale
        s = s - jnp.max(s, axis=-1, keepdims=True)
        p = jnp.exp(s)
        p = p * pl.reciprocal(jnp.sum(p, axis=-1, keepdims=True), approx=True)
        a_h = jnp.dot(p.astype(jnp.bfloat16), v, preferred_element_type=jnp.float32)
        # accumulate this head's out_proj contribution (no (S, hd) concatenate)
        z = z + jnp.dot(a_h.astype(jnp.bfloat16), wo[lo:lo + head_dim, :],
                        preferred_element_type=jnp.float32)
    o_ref[...] = _layernorm(z, g_ref[...], be_ref[...], eps).astype(o_ref.dtype)


def _ffn_add_ln_kernel(x_ref, w1_ref, b1_ref, w2_ref, b2_ref, g_ref, be_ref, o_ref,
                       *, eps):
    # lin1 + ReLU + lin2 + residual + LayerNorm2, fused; the (tm, dim_ff) intermediate
    # stays in VMEM/vregs and never touches HBM.
    # TODO(synk): tile over dim_ff with a VMEM partial-sum accumulator for very large
    #             D/dim_ff on v7x (64 MiB VMEM).
    x = x_ref[...]                                             # (tm, D) bf16
    h = jnp.maximum(
        jnp.dot(x, w1_ref[...], preferred_element_type=jnp.float32) + b1_ref[...], 0.0)
    z = (jnp.dot(h.astype(jnp.bfloat16), w2_ref[...], preferred_element_type=jnp.float32)
         + b2_ref[...] + x.astype(jnp.float32))
    o_ref[...] = _layernorm(z, g_ref[...], be_ref[...], eps).astype(o_ref.dtype)


def _linear_kernel(x_ref, w_ref, b_ref, o_ref):
    y = jnp.dot(x_ref[...].astype(jnp.bfloat16), w_ref[...],
                preferred_element_type=jnp.float32)
    o_ref[...] = (y + b_ref[...]).astype(o_ref.dtype)


# ------------------------------ kernel wrappers ------------------------------

def _row_call(kernel, rows, out_cols, row_inputs, const_inputs, *, out_dtype,
              tile_target=512, flops=0, transcendentals=0):
    """Row-tiled pallas_call: row_inputs tiled along axis 0, const_inputs full-block."""
    tm = _pick_row_tile(rows, tile_target)
    grid = (pl.cdiv(rows, tm),)
    in_specs = [pl.BlockSpec((tm, a.shape[1]), lambda i: (i, 0)) for a in row_inputs]
    in_specs += [_const_spec(a) for a in const_inputs]
    return pl.pallas_call(
        kernel,
        grid=grid,
        in_specs=in_specs,
        out_specs=pl.BlockSpec((tm, out_cols), lambda i: (i, 0)),
        out_shape=jax.ShapeDtypeStruct((rows, out_cols), out_dtype),
        compiler_params=_compiler_params(),
        cost_estimate=pl.CostEstimate(
            flops=flops, transcendentals=transcendentals,
            bytes_accessed=_bytes_accessed(row_inputs, const_inputs, rows, out_cols,
                                           out_dtype)),
    )(*row_inputs, *const_inputs)


def _batch_call(kernel, batch, seq, out_cols, row_inputs, const_inputs, *, out_dtype,
                flops=0, transcendentals=0):
    """Per-batch pallas_call: one grid step = one batch element's contiguous S rows."""
    rows = batch * seq
    in_specs = [pl.BlockSpec((seq, a.shape[1]), lambda b: (b, 0)) for a in row_inputs]
    in_specs += [_const_spec(a) for a in const_inputs]
    return pl.pallas_call(
        kernel,
        grid=(batch,),
        in_specs=in_specs,
        out_specs=pl.BlockSpec((seq, out_cols), lambda b: (b, 0)),
        out_shape=jax.ShapeDtypeStruct((rows, out_cols), out_dtype),
        compiler_params=_compiler_params(),
        cost_estimate=pl.CostEstimate(
            flops=flops, transcendentals=transcendentals,
            bytes_accessed=_bytes_accessed(row_inputs, const_inputs, rows, out_cols,
                                           out_dtype)),
    )(*row_inputs, *const_inputs)


# ------------------------------- model glue --------------------------------

def positional_encoding(max_len, d_model):
    position = jnp.arange(max_len, dtype=jnp.float32)[:, None]
    div_term = jnp.exp(
        jnp.arange(0, d_model, 2, dtype=jnp.float32) * (-math.log(10000.0) / d_model))
    pe = jnp.zeros((max_len, d_model), dtype=jnp.float32)
    pe = pe.at[:, 0::2].set(jnp.sin(position * div_term))
    pe = pe.at[:, 1::2].set(jnp.cos(position * div_term))
    return pe


def encoder_layer(x, p, num_heads, batch, seq):
    # x: (B*S, D) bf16, batch-major rows
    rows, d = x.shape
    hd = d // num_heads
    dim_ff = p["lin1_w"].shape[1]

    attn_kern = functools.partial(_attn_ln_kernel, num_heads=num_heads, head_dim=hd,
                                  sm_scale=1.0 / math.sqrt(hd), eps=_EPS)
    x1 = _batch_call(
        attn_kern, batch, seq, d, [x],
        [p["in_proj_w"], p["in_proj_b"], p["out_proj_w"], p["out_proj_b"],
         p["ln1_w"], p["ln1_b"]],
        out_dtype=jnp.bfloat16,
        flops=2 * rows * d * 3 * d + 4 * rows * seq * d + 2 * rows * d * d,
        transcendentals=rows * seq * num_heads)

    x2 = _row_call(
        functools.partial(_ffn_add_ln_kernel, eps=_EPS), rows, d, [x1],
        [p["lin1_w"], p["lin1_b"], p["lin2_w"], p["lin2_b"], p["ln2_w"], p["ln2_b"]],
        out_dtype=jnp.bfloat16, tile_target=256,
        flops=4 * rows * d * dim_ff)
    return x2


def transformer_forward(src, params, num_heads):
    # src: (S, B, input_dim) float32 (seq-first, nn.Transformer convention)
    seq, batch, input_dim = src.shape
    d = params["enc_w"].shape[1]
    rows = batch * seq

    x_rows = src.transpose(1, 0, 2).reshape(rows, input_dim)   # batch-major rows
    pe = params["pe"][:seq]                                    # (S, D) constant block

    x = _batch_call(
        functools.partial(_enc_pe_kernel, scale=math.sqrt(d)),
        batch, seq, d, [x_rows], [pe, params["enc_w"], params["enc_b"]],
        out_dtype=jnp.bfloat16, flops=2 * rows * input_dim * d)

    for layer_p in params["layers"]:
        x = encoder_layer(x, layer_p, num_heads, batch, seq)

    out = _row_call(_linear_kernel, rows, _DEC_PAD, [x],
                    [params["dec_w"], params["dec_b"]],
                    out_dtype=jnp.float32, flops=2 * rows * d * _DEC_PAD)
    out = out[:, :_DEC_OUT]                                    # drop lane padding
    return out.reshape(batch, seq, _DEC_OUT).transpose(1, 0, 2)


def init_params(key, input_dim, model_dim, num_heads, num_layers, dim_ff, max_len=5000):
    initrange = 0.1
    n_keys = 4 + 8 * num_layers
    ks = jax.random.split(key, n_keys)
    ki = iter(range(n_keys))

    def u(shape, bound):
        return jax.random.uniform(ks[next(ki)], shape, jnp.float32, -bound, bound)

    def w(in_f, out_f, bound):
        # weights stored pre-transposed (in, out), bf16 for the MXU operand path
        return u((in_f, out_f), bound).astype(jnp.bfloat16)

    def b(n, bound):
        return u((n,), bound).reshape(1, n)     # biases kept f32, 2-D for VMEM blocks

    enc_w = w(input_dim, model_dim, initrange)
    enc_b = b(model_dim, 1.0 / math.sqrt(input_dim))

    dec_w = jnp.zeros((model_dim, _DEC_PAD), jnp.float32)
    dec_w = dec_w.at[:, :_DEC_OUT].set(u((model_dim, _DEC_OUT), initrange))
    dec_b = jnp.zeros((1, _DEC_PAD), jnp.float32)
    dec_b = dec_b.at[:, :_DEC_OUT].set(u((_DEC_OUT,), 1.0 / math.sqrt(model_dim)))

    params = {
        "enc_w": enc_w, "enc_b": enc_b,
        "dec_w": dec_w.astype(jnp.bfloat16), "dec_b": dec_b,
        "pe": positional_encoding(max_len, model_dim),
        "layers": [],
    }
    sd = 1.0 / math.sqrt(model_dim)
    sf = 1.0 / math.sqrt(dim_ff)
    for _ in range(num_layers):
        params["layers"].append({
            "in_proj_w": w(model_dim, 3 * model_dim, sd),   # columns: [q | k | v]
            "in_proj_b": b(3 * model_dim, sd),
            "out_proj_w": w(model_dim, model_dim, sd),
            "out_proj_b": b(model_dim, sd),
            "lin1_w": w(model_dim, dim_ff, sd),
            "lin1_b": b(dim_ff, sd),
            "lin2_w": w(dim_ff, model_dim, sf),
            "lin2_b": b(model_dim, sf),
            "ln1_w": jnp.ones((1, model_dim), jnp.float32),
            "ln1_b": jnp.zeros((1, model_dim), jnp.float32),
            "ln2_w": jnp.ones((1, model_dim), jnp.float32),
            "ln2_b": jnp.zeros((1, model_dim), jnp.float32),
        })
    return params


if __name__ == "__main__":
    # small shapes consistent with the module
    S, B = 8, 2
    input_dim, model_dim, num_heads, num_layers, dim_ff = 4, 32, 4, 2, 64

    key = jax.random.PRNGKey(0)
    pkey, xkey = jax.random.split(key)
    params = init_params(pkey, input_dim, model_dim, num_heads, num_layers, dim_ff)
    src = jax.random.normal(xkey, (S, B, input_dim), dtype=jnp.float32)

    fwd = jax.jit(functools.partial(transformer_forward, num_heads=num_heads))
    out = jax.block_until_ready(fwd(src, params))

    assert out.shape == (S, B, 50), out.shape
    assert bool(jnp.isfinite(out).all())
    print("KERNEL_OK")
</pallas_src>

<mosaic_0001>
module attributes {stable_mosaic.version = 11 : i64} {
  func.func @_attn_ln_kernel(%arg0: i32, %arg1: memref<8x32xbf16, #tpu.memory_space<vmem>>, %arg2: memref<32x96xbf16, #tpu.memory_space<vmem>>, %arg3: memref<1x96xf32, #tpu.memory_space<vmem>>, %arg4: memref<32x32xbf16, #tpu.memory_space<vmem>>, %arg5: memref<1x32xf32, #tpu.memory_space<vmem>>, %arg6: memref<1x32xf32, #tpu.memory_space<vmem>>, %arg7: memref<1x32xf32, #tpu.memory_space<vmem>>, %arg8: memref<8x32xbf16, #tpu.memory_space<vmem>>) attributes {dimension_semantics = [#tpu.dimension_semantics<parallel>], iteration_bounds = array<i64: 2>, scalar_prefetch = 0 : i64, scratch_operands = 0 : i64, tpu.core_type = #tpu.core_type<tc>, window_params = [{transform_indices = @transform_0, window_bounds = array<i64: 8, 32>}, {pipeline_mode = #tpu.pipeline_mode<synchronous>, transform_indices = @transform_1, window_bounds = array<i64: 32, 96>}, {pipeline_mode = #tpu.pipeline_mode<synchronous>, transform_indices = @transform_2, window_bounds = array<i64: 1, 96>}, {pipeline_mode = #tpu.pipeline_mode<synchronous>, transform_indices = @transform_3, window_bounds = array<i64: 32, 32>}, {pipeline_mode = #tpu.pipeline_mode<synchronous>, transform_indices = @transform_4, window_bounds = array<i64: 1, 32>}, {pipeline_mode = #tpu.pipeline_mode<synchronous>, transform_indices = @transform_5, window_bounds = array<i64: 1, 32>}, {pipeline_mode = #tpu.pipeline_mode<synchronous>, transform_indices = @transform_6, window_bounds = array<i64: 1, 32>}, {transform_indices = @transform_7, window_bounds = array<i64: 8, 32>}]} {
    %c0 = arith.constant 0 : index
    %c0_0 = arith.constant 0 : index
    %0 = vector.load %arg1[%c0, %c0_0] : memref<8x32xbf16, #tpu.memory_space<vmem>>, vector<8x32xbf16>
    %c0_1 = arith.constant 0 : index
    %c0_2 = arith.constant 0 : index
    %1 = vector.load %arg2[%c0_1, %c0_2] : memref<32x96xbf16, #tpu.memory_space<vmem>>, vector<32x96xbf16>
    %cst = arith.constant dense<0.000000e+00> : vector<8x96xf32>
    %2 = tpu.matmul %0, %1, %cst {dimension_numbers = #tpu.dot_dimension_numbers<[1], [0], [0], [1], [0, 0, 1, 1], [], []>} : vector<8x32xbf16>, vector<32x96xbf16>, vector<8x96xf32> -> vector<8x96xf32>
    %c0_3 = arith.constant 0 : index
    %c0_4 = arith.constant 0 : index
    %3 = vector.load %arg3[%c0_3, %c0_4] : memref<1x96xf32, #tpu.memory_space<vmem>>, vector<1x96xf32>
    %4 = vector.broadcast %3 : vector<1x96xf32> to vector<8x96xf32>
    %5 = arith.addf %2, %4 : vector<8x96xf32>
    %c0_5 = arith.constant 0 : index
    %c0_6 = arith.constant 0 : index
    %6 = vector.load %arg4[%c0_5, %c0_6] : memref<32x32xbf16, #tpu.memory_space<vmem>>, vector<32x32xbf16>
    %7 = arith.extf %0 : vector<8x32xbf16> to vector<8x32xf32>
    %c0_7 = arith.constant 0 : index
    %c0_8 = arith.constant 0 : index
    %8 = vector.load %arg5[%c0_7, %c0_8] : memref<1x32xf32, #tpu.memory_space<vmem>>, vector<1x32xf32>
    %9 = vector.broadcast %8 : vector<1x32xf32> to vector<8x32xf32>
    %10 = arith.addf %7, %9 : vector<8x32xf32>
    %11 = vector.extract_strided_slice %5 {offsets = [0, 0], sizes = [8, 8], strides = [1, 1]} : vector<8x96xf32> to vector<8x8xf32>
    %12 = arith.truncf %11 : vector<8x8xf32> to vector<8x8xbf16>
    %13 = vector.extract_strided_slice %5 {offsets = [0, 32], sizes = [8, 8], strides = [1, 1]} : vector<8x96xf32> to vector<8x8xf32>
    %14 = arith.truncf %13 : vector<8x8xf32> to vector<8x8xbf16>
    %15 = vector.extract_strided_slice %5 {offsets = [0, 64], sizes = [8, 8], strides = [1, 1]} : vector<8x96xf32> to vector<8x8xf32>
    %16 = arith.truncf %15 : vector<8x8xf32> to vector<8x8xbf16>
    %cst_9 = arith.constant dense<0.000000e+00> : vector<8x8xf32>
    %17 = tpu.matmul %12, %14, %cst_9 {dimension_numbers = #tpu.dot_dimension_numbers<[1], [1], [0], [0], [0, 0, 1, 0], [], []>} : vector<8x8xbf16>, vector<8x8xbf16>, vector<8x8xf32> -> vector<8x8xf32>
    %cst_10 = arith.constant 0.353553385 : f32
    %18 = vector.broadcast %cst_10 : f32 to vector<8x8xf32>
    %19 = arith.mulf %17, %18 : vector<8x8xf32>
    %cst_11 = arith.constant dense<0xFF800000> : vector<8xf32>
    %20 = vector.multi_reduction <maximumf>, %19, %cst_11 [1] : vector<8x8xf32> to vector<8xf32>
    %21 = vector.shape_cast %20 : vector<8xf32> to vector<8x1xf32>
    %22 = vector.broadcast %21 : vector<8x1xf32> to vector<8x8xf32>
    %23 = arith.subf %19, %22 : vector<8x8xf32>
    %24 = math.exp %23 : vector<8x8xf32>
    %cst_12 = arith.constant dense<0.000000e+00> : vector<8xf32>
    %25 = vector.multi_reduction <add>, %24, %cst_12 [1] : vector<8x8xf32> to vector<8xf32>
    %26 = vector.shape_cast %25 : vector<8xf32> to vector<8x1xf32>
    %27 = tpu.reciprocal %26 {approx = true} : vector<8x1xf32> -> vector<8x1xf32>
    %28 = vector.broadcast %27 : vector<8x1xf32> to vector<8x8xf32>
    %29 = arith.mulf %24, %28 : vector<8x8xf32>
    %30 = arith.truncf %29 : vector<8x8xf32> to vector<8x8xbf16>
    %cst_13 = arith.constant dense<0.000000e+00> : vector<8x8xf32>
    %31 = tpu.matmul %30, %16, %cst_13 {dimension_numbers = #tpu.dot_dimension_numbers<[1], [0], [0], [1], [0, 0, 1, 1], [], []>} : vector<8x8xbf16>, vector<8x8xbf16>, vector<8x8xf32> -> vector<8x8xf32>
    %32 = arith.truncf %31 : vector<8x8xf32> to vector<8x8xbf16>
    %33 = vector.extract_strided_slice %6 {offsets = [0, 0], sizes = [8, 32], strides = [1, 1]} : vector<32x32xbf16> to vector<8x32xbf16>
    %cst_14 = arith.constant dense<0.000000e+00> : vector<8x32xf32>
    %34 = tpu.matmul %32, %33, %cst_14 {dimension_numbers = #tpu.dot_dimension_numbers<[1], [0], [0], [1], [0, 0, 1, 1], [], []>} : vector<8x8xbf16>, vector<8x32xbf16>, vector<8x32xf32> -> vector<8x32xf32>
    %35 = arith.addf %10, %34 : vector<8x32xf32>
    %36 = vector.extract_strided_slice %5 {offsets = [0, 8], sizes = [8, 8], strides = [1, 1]} : vector<8x96xf32> to vector<8x8xf32>
    %37 = arith.truncf %36 : vector<8x8xf32> to vector<8x8xbf16>
    %38 = vector.extract_strided_slice %5 {offsets = [0, 40], sizes = [8, 8], strides = [1, 1]} : vector<8x96xf32> to vector<8x8xf32>
    %39 = arith.truncf %38 : vector<8x8xf32> to vector<8x8xbf16>
    %40 = vector.extract_strided_slice %5 {offsets = [0, 72], sizes = [8, 8], strides = [1, 1]} : vector<8x96xf32> to vector<8x8xf32>
    %41 = arith.truncf %40 : vector<8x8xf32> to vector<8x8xbf16>
    %cst_15 = arith.constant dense<0.000000e+00> : vector<8x8xf32>
    %42 = tpu.matmul %37, %39, %cst_15 {dimension_numbers = #tpu.dot_dimension_numbers<[1], [1], [0], [0], [0, 0, 1, 0], [], []>} : vector<8x8xbf16>, vector<8x8xbf16>, vector<8x8xf32> -> vector<8x8xf32>
    %cst_16 = arith.constant 0.353553385 : f32
    %43 = vector.broadcast %cst_16 : f32 to vector<8x8xf32>
    %44 = arith.mulf %42, %43 : vector<8x8xf32>
    %cst_17 = arith.constant dense<0xFF800000> : vector<8xf32>
    %45 = vector.multi_reduction <maximumf>, %44, %cst_17 [1] : vector<8x8xf32> to vector<8xf32>
    %46 = vector.shape_cast %45 : vector<8xf32> to vector<8x1xf32>
    %47 = vector.broadcast %46 : vector<8x1xf32> to vector<8x8xf32>
    %48 = arith.subf %44, %47 : vector<8x8xf32>
    %49 = math.exp %48 : vector<8x8xf32>
    %cst_18 = arith.constant dense<0.000000e+00> : vector<8xf32>
    %50 = vector.multi_reduction <add>, %49, %cst_18 [1] : vector<8x8xf32> to vector<8xf32>
    %51 = vector.shape_cast %50 : vector<8xf32> to vector<8x1xf32>
    %52 = tpu.reciprocal %51 {approx = true} : vector<8x1xf32> -> vector<8x1xf32>
    %53 = vector.broadcast %52 : vector<8x1xf32> to vector<8x8xf32>
    %54 = arith.mulf %49, %53 : vector<8x8xf32>
    %55 = arith.truncf %54 : vector<8x8xf32> to vector<8x8xbf16>
    %cst_19 = arith.constant dense<0.000000e+00> : vector<8x8xf32>
    %56 = tpu.matmul %55, %41, %cst_19 {dimension_numbers = #tpu.dot_dimension_numbers<[1], [0], [0], [1], [0, 0, 1, 1], [], []>} : vector<8x8xbf16>, vector<8x8xbf16>, vector<8x8xf32> -> vector<8x8xf32>
    %57 = arith.truncf %56 : vector<8x8xf32> to vector<8x8xbf16>
    %58 = vector.extract_strided_slice %6 {offsets = [8, 0], sizes = [8, 32], strides = [1, 1]} : vector<32x32xbf16> to vector<8x32xbf16>
    %cst_20 = arith.constant dense<0.000000e+00> : vector<8x32xf32>
    %59 = tpu.matmul %57, %58, %cst_20 {dimension_numbers = #tpu.dot_dimension_numbers<[1], [0], [0], [1], [0, 0, 1, 1], [], []>} : vector<8x8xbf16>, vector<8x32xbf16>, vector<8x32xf32> -> vector<8x32xf32>
    %60 = arith.addf %35, %59 : vector<8x32xf32>
    %61 = vector.extract_strided_slice %5 {offsets = [0, 16], sizes = [8, 8], strides = [1, 1]} : vector<8x96xf32> to vector<8x8xf32>
    %62 = arith.truncf %61 : vector<8x8xf32> to vector<8x8xbf16>
    %63 = vector.extract_strided_slice %5 {offsets = [0, 48], sizes = [8, 8], strides = [1, 1]} : vector<8x96xf32> to vector<8x8xf32>
    %64 = arith.truncf %63 : vector<8x8xf32> to vector<8x8xbf16>
    %65 = vector.extract_strided_slice %5 {offsets = [0, 80], sizes = [8, 8], strides = [1, 1]} : vector<8x96xf32> to vector<8x8xf32>
    %66 = arith.truncf %65 : vector<8x8xf32> to vector<8x8xbf16>
    %cst_21 = arith.constant dense<0.000000e+00> : vector<8x8xf32>
    %67 = tpu.matmul %62, %64, %cst_21 {dimension_numbers = #tpu.dot_dimension_numbers<[1], [1], [0], [0], [0, 0, 1, 0], [], []>} : vector<8x8xbf16>, vector<8x8xbf16>, vector<8x8xf32> -> vector<8x8xf32>
    %cst_22 = arith.constant 0.353553385 : f32
    %68 = vector.broadcast %cst_22 : f32 to vector<8x8xf32>
    %69 = arith.mulf %67, %68 : vector<8x8xf32>
    %cst_23 = arith.constant dense<0xFF800000> : vector<8xf32>
    %70 = vector.multi_reduction <maximumf>, %69, %cst_23 [1] : vector<8x8xf32> to vector<8xf32>
    %71 = vector.shape_cast %70 : vector<8xf32> to vector<8x1xf32>
    %72 = vector.broadcast %71 : vector<8x1xf32> to vector<8x8xf32>
    %73 = arith.subf %69, %72 : vector<8x8xf32>
    %74 = math.exp %73 : vector<8x8xf32>
    %cst_24 = arith.constant dense<0.000000e+00> : vector<8xf32>
    %75 = vector.multi_reduction <add>, %74, %cst_24 [1] : vector<8x8xf32> to vector<8xf32>
    %76 = vector.shape_cast %75 : vector<8xf32> to vector<8x1xf32>
    %77 = tpu.reciprocal %76 {approx = true} : vector<8x1xf32> -> vector<8x1xf32>
    %78 = vector.broadcast %77 : vector<8x1xf32> to vector<8x8xf32>
    %79 = arith.mulf %74, %78 : vector<8x8xf32>
    %80 = arith.truncf %79 : vector<8x8xf32> to vector<8x8xbf16>
    %cst_25 = arith.constant dense<0.000000e+00> : vector<8x8xf32>
    %81 = tpu.matmul %80, %66, %cst_25 {dimension_numbers = #tpu.dot_dimension_numbers<[1], [0], [0], [1], [0, 0, 1, 1], [], []>} : vector<8x8xbf16>, vector<8x8xbf16>, vector<8x8xf32> -> vector<8x8xf32>
    %82 = arith.truncf %81 : vector<8x8xf32> to vector<8x8xbf16>
    %83 = vector.extract_strided_slice %6 {offsets = [16, 0], sizes = [8, 32], strides = [1, 1]} : vector<32x32xbf16> to vector<8x32xbf16>
    %cst_26 = arith.constant dense<0.000000e+00> : vector<8x32xf32>
    %84 = tpu.matmul %82, %83, %cst_26 {dimension_numbers = #tpu.dot_dimension_numbers<[1], [0], [0], [1], [0, 0, 1, 1], [], []>} : vector<8x8xbf16>, vector<8x32xbf16>, vector<8x32xf32> -> vector<8x32xf32>
    %85 = arith.addf %60, %84 : vector<8x32xf32>
    %86 = vector.extract_strided_slice %5 {offsets = [0, 24], sizes = [8, 8], strides = [1, 1]} : vector<8x96xf32> to vector<8x8xf32>
    %87 = arith.truncf %86 : vector<8x8xf32> to vector<8x8xbf16>
    %88 = vector.extract_strided_slice %5 {offsets = [0, 56], sizes = [8, 8], strides = [1, 1]} : vector<8x96xf32> to vector<8x8xf32>
    %89 = arith.truncf %88 : vector<8x8xf32> to vector<8x8xbf16>
    %90 = vector.extract_strided_slice %5 {offsets = [0, 88], sizes = [8, 8], strides = [1, 1]} : vector<8x96xf32> to vector<8x8xf32>
    %91 = arith.truncf %90 : vector<8x8xf32> to vector<8x8xbf16>
    %cst_27 = arith.constant dense<0.000000e+00> : vector<8x8xf32>
    %92 = tpu.matmul %87, %89, %cst_27 {dimension_numbers = #tpu.dot_dimension_numbers<[1], [1], [0], [0], [0, 0, 1, 0], [], []>} : vector<8x8xbf16>, vector<8x8xbf16>, vector<8x8xf32> -> vector<8x8xf32>
    %cst_28 = arith.constant 0.353553385 : f32
    %93 = vector.broadcast %cst_28 : f32 to vector<8x8xf32>
    %94 = arith.mulf %92, %93 : vector<8x8xf32>
    %cst_29 = arith.constant dense<0xFF800000> : vector<8xf32>
    %95 = vector.multi_reduction <maximumf>, %94, %cst_29 [1] : vector<8x8xf32> to vector<8xf32>
    %96 = vector.shape_cast %95 : vector<8xf32> to vector<8x1xf32>
    %97 = vector.broadcast %96 : vector<8x1xf32> to vector<8x8xf32>
    %98 = arith.subf %94, %97 : vector<8x8xf32>
    %99 = math.exp %98 : vector<8x8xf32>
    %cst_30 = arith.constant dense<0.000000e+00> : vector<8xf32>
    %100 = vector.multi_reduction <add>, %99, %cst_30 [1] : vector<8x8xf32> to vector<8xf32>
    %101 = vector.shape_cast %100 : vector<8xf32> to vector<8x1xf32>
    %102 = tpu.reciprocal %101 {approx = true} : vector<8x1xf32> -> vector<8x1xf32>
    %103 = vector.broadcast %102 : vector<8x1xf32> to vector<8x8xf32>
    %104 = arith.mulf %99, %103 : vector<8x8xf32>
    %105 = arith.truncf %104 : vector<8x8xf32> to vector<8x8xbf16>
    %cst_31 = arith.constant dense<0.000000e+00> : vector<8x8xf32>
    %106 = tpu.matmul %105, %91, %cst_31 {dimension_numbers = #tpu.dot_dimension_numbers<[1], [0], [0], [1], [0, 0, 1, 1], [], []>} : vector<8x8xbf16>, vector<8x8xbf16>, vector<8x8xf32> -> vector<8x8xf32>
    %107 = arith.truncf %106 : vector<8x8xf32> to vector<8x8xbf16>
    %108 = vector.extract_strided_slice %6 {offsets = [24, 0], sizes = [8, 32], strides = [1, 1]} : vector<32x32xbf16> to vector<8x32xbf16>
    %cst_32 = arith.constant dense<0.000000e+00> : vector<8x32xf32>
    %109 = tpu.matmul %107, %108, %cst_32 {dimension_numbers = #tpu.dot_dimension_numbers<[1], [0], [0], [1], [0, 0, 1, 1], [], []>} : vector<8x8xbf16>, vector<8x32xbf16>, vector<8x32xf32> -> vector<8x32xf32>
    %110 = arith.addf %85, %109 : vector<8x32xf32>
    %c0_33 = arith.constant 0 : index
    %c0_34 = arith.constant 0 : index
    %111 = vector.load %arg6[%c0_33, %c0_34] : memref<1x32xf32, #tpu.memory_space<vmem>>, vector<1x32xf32>
    %c0_35 = arith.constant 0 : index
    %c0_36 = arith.constant 0 : index
    %112 = vector.load %arg7[%c0_35, %c0_36] : memref<1x32xf32, #tpu.memory_space<vmem>>, vector<1x32xf32>
    %cst_37 = arith.constant dense<0.000000e+00> : vector<8xf32>
    %113 = vector.multi_reduction <add>, %110, %cst_37 [1] : vector<8x32xf32> to vector<8xf32>
    %114 = vector.shape_cast %113 : vector<8xf32> to vector<8x1xf32>
    %cst_38 = arith.constant 3.200000e+01 : f32
    %115 = vector.broadcast %cst_38 : f32 to vector<8x1xf32>
    %116 = arith.divf %114, %115 : vector<8x1xf32>
    %117 = vector.broadcast %116 : vector<8x1xf32> to vector<8x32xf32>
    %118 = arith.subf %110, %117 : vector<8x32xf32>
    %119 = arith.mulf %118, %118 : vector<8x32xf32>
    %cst_39 = arith.constant dense<0.000000e+00> : vector<8xf32>
    %120 = vector.multi_reduction <add>, %119, %cst_39 [1] : vector<8x32xf32> to vector<8xf32>
    %121 = vector.shape_cast %120 : vector<8xf32> to vector<8x1xf32>
    %cst_40 = arith.constant 3.200000e+01 : f32
    %122 = vector.broadcast %cst_40 : f32 to vector<8x1xf32>
    %123 = arith.divf %121, %122 : vector<8x1xf32>
    %cst_41 = arith.constant 9.99999974E-6 : f32
    %124 = vector.broadcast %cst_41 : f32 to vector<8x1xf32>
    %125 = arith.addf %123, %124 : vector<8x1xf32>
    %126 = math.rsqrt %125 : vector<8x1xf32>
    %127 = vector.broadcast %126 : vector<8x1xf32> to vector<8x32xf32>
    %128 = arith.mulf %118, %127 : vector<8x32xf32>
    %129 = vector.broadcast %111 : vector<1x32xf32> to vector<8x32xf32>
    %130 = arith.mulf %128, %129 : vector<8x32xf32>
    %131 = vector.broadcast %112 : vector<1x32xf32> to vector<8x32xf32>
    %132 = arith.addf %130, %131 : vector<8x32xf32>
    %133 = arith.truncf %132 : vector<8x32xf32> to vector<8x32xbf16>
    %c0_42 = arith.constant 0 : index
    %c0_43 = arith.constant 0 : index
    %134 = vector.load %arg8[%c0_42, %c0_43] : memref<8x32xbf16, #tpu.memory_space<vmem>>, vector<8x32xbf16>
    tpu.vector_store %arg8[%c0_42, %c0_43], %133 {strides = array<i32>} : memref<8x32xbf16, #tpu.memory_space<vmem>>, vector<8x32xbf16>,
    return
  }
  func.func @transform_0(%arg0: i32) -> (i32, i32) {
    %c0_i32 = arith.constant 0 : i32
    %c0_i32_0 = arith.constant 0 : i32
    return %arg0, %c0_i32 : i32, i32
  }
  func.func @transform_1(%arg0: i32) -> (i32, i32) {
    %c0_i32 = arith.constant 0 : i32
    %c0_i32_0 = arith.constant 0 : i32
    %c0_i32_1 = arith.constant 0 : i32
    return %c0_i32, %c0_i32_0 : i32, i32
  }
  func.func @transform_2(%arg0: i32) -> (i32, i32) {
    %c0_i32 = arith.constant 0 : i32
    %c0_i32_0 = arith.constant 0 : i32
    %c0_i32_1 = arith.constant 0 : i32
    return %c0_i32, %c0_i32_0 : i32, i32
  }
  func.func @transform_3(%arg0: i32) -> (i32, i32) {
    %c0_i32 = arith.constant 0 : i32
    %c0_i32_0 = arith.constant 0 : i32
    %c0_i32_1 = arith.constant 0 : i32
    return %c0_i32, %c0_i32_0 : i32, i32
  }
  func.func @transform_4(%arg0: i32) -> (i32, i32) {
    %c0_i32 = arith.constant 0 : i32
    %c0_i32_0 = arith.constant 0 : i32
    %c0_i32_1 = arith.constant 0 : i32
    return %c0_i32, %c0_i32_0 : i32, i32
  }
  func.func @transform_5(%arg0: i32) -> (i32, i32) {
    %c0_i32 = arith.constant 0 : i32
    %c0_i32_0 = arith.constant 0 : i32
    %c0_i32_1 = arith.constant 0 : i32
    return %c0_i32, %c0_i32_0 : i32, i32
  }
  func.func @transform_6(%arg0: i32) -> (i32, i32) {
    %c0_i32 = arith.constant 0 : i32
    %c0_i32_0 = arith.constant 0 : i32
    %c0_i32_1 = arith.constant 0 : i32
    return %c0_i32, %c0_i32_0 : i32, i32
  }
  func.func @transform_7(%arg0: i32) -> (i32, i32) {
    %c0_i32 = arith.constant 0 : i32
    %c0_i32_0 = arith.constant 0 : i32
    return %arg0, %c0_i32 : i32, i32
  }
}

module attributes {stable_mosaic.version = 11 : i64} {
  func.func @_enc_pe_kernel(%arg0: i32, %arg1: memref<8x4xf32, #tpu.memory_space<vmem>>, %arg2: memref<8x32xf32, #tpu.memory_space<vmem>>, %arg3: memref<4x32xbf16, #tpu.memory_space<vmem>>, %arg4: memref<1x32xf32, #tpu.memory_space<vmem>>, %arg5: memref<8x32xbf16, #tpu.memory_space<vmem>>) attributes {dimension_semantics = [#tpu.dimension_semantics<parallel>], iteration_bounds = array<i64: 2>, scalar_prefetch = 0 : i64, scratch_operands = 0 : i64, tpu.core_type = #tpu.core_type<tc>, window_params = [{transform_indices = @transform_0, window_bounds = array<i64: 8, 4>}, {pipeline_mode = #tpu.pipeline_mode<synchronous>, transform_indices = @transform_1, window_bounds = array<i64: 8, 32>}, {pipeline_mode = #tpu.pipeline_mode<synchronous>, transform_indices = @transform_2, window_bounds = array<i64: 4, 32>}, {pipeline_mode = #tpu.pipeline_mode<synchronous>, transform_indices = @transform_3, window_bounds = array<i64: 1, 32>}, {transform_indices = @transform_4, window_bounds = array<i64: 8, 32>}]} {
    %c0 = arith.constant 0 : index
    %c0_0 = arith.constant 0 : index
    %0 = vector.load %arg1[%c0, %c0_0] : memref<8x4xf32, #tpu.memory_space<vmem>>, vector<8x4xf32>
    %1 = arith.truncf %0 : vector<8x4xf32> to vector<8x4xbf16>
    %c0_1 = arith.constant 0 : index
    %c0_2 = arith.constant 0 : index
    %2 = vector.load %arg3[%c0_1, %c0_2] : memref<4x32xbf16, #tpu.memory_space<vmem>>, vector<4x32xbf16>
    %cst = arith.constant dense<0.000000e+00> : vector<8x32xf32>
    %3 = tpu.matmul %1, %2, %cst {dimension_numbers = #tpu.dot_dimension_numbers<[1], [0], [0], [1], [0, 0, 1, 1], [], []>} : vector<8x4xbf16>, vector<4x32xbf16>, vector<8x32xf32> -> vector<8x32xf32>
    %c0_3 = arith.constant 0 : index
    %c0_4 = arith.constant 0 : index
    %4 = vector.load %arg4[%c0_3, %c0_4] : memref<1x32xf32, #tpu.memory_space<vmem>>, vector<1x32xf32>
    %5 = vector.broadcast %4 : vector<1x32xf32> to vector<8x32xf32>
    %6 = arith.addf %3, %5 : vector<8x32xf32>
    %cst_5 = arith.constant 5.65685415 : f32
    %7 = vector.broadcast %cst_5 : f32 to vector<8x32xf32>
    %8 = arith.mulf %6, %7 : vector<8x32xf32>
    %c0_6 = arith.constant 0 : index
    %c0_7 = arith.constant 0 : index
    %9 = vector.load %arg2[%c0_6, %c0_7] : memref<8x32xf32, #tpu.memory_space<vmem>>, vector<8x32xf32>
    %10 = arith.addf %8, %9 : vector<8x32xf32>
    %11 = arith.truncf %10 : vector<8x32xf32> to vector<8x32xbf16>
    %c0_8 = arith.constant 0 : index
    %c0_9 = arith.constant 0 : index
    %12 = vector.load %arg5[%c0_8, %c0_9] : memref<8x32xbf16, #tpu.memory_space<vmem>>, vector<8x32xbf16>
    tpu.vector_store %arg5[%c0_8, %c0_9], %11 {strides = array<i32>} : memref<8x32xbf16, #tpu.memory_space<vmem>>, vector<8x32xbf16>,
    return
  }
  func.func @transform_0(%arg0: i32) -> (i32, i32) {
    %c0_i32 = arith.constant 0 : i32
    %c0_i32_0 = arith.constant 0 : i32
    return %arg0, %c0_i32 : i32, i32
  }
  func.func @transform_1(%arg0: i32) -> (i32, i32) {
    %c0_i32 = arith.constant 0 : i32
    %c0_i32_0 = arith.constant 0 : i32
    %c0_i32_1 = arith.constant 0 : i32
    return %c0_i32, %c0_i32_0 : i32, i32
  }
  func.func @transform_2(%arg0: i32) -> (i32, i32) {
    %c0_i32 = arith.constant 0 : i32
    %c0_i32_0 = arith.constant 0 : i32
    %c0_i32_1 = arith.constant 0 : i32
    return %c0_i32, %c0_i32_0 : i32, i32
  }
  func.func @transform_3(%arg0: i32) -> (i32, i32) {
    %c0_i32 = arith.constant 0 : i32
    %c0_i32_0 = arith.constant 0 : i32
    %c0_i32_1 = arith.constant 0 : i32
    return %c0_i32, %c0_i32_0 : i32, i32
  }
  func.func @transform_4(%arg0: i32) -> (i32, i32) {
    %c0_i32 = arith.constant 0 : i32
    %c0_i32_0 = arith.constant 0 : i32
    return %arg0, %c0_i32 : i32, i32
  }
}

module attributes {stable_mosaic.version = 11 : i64} {
  func.func @_ffn_add_ln_kernel(%arg0: i32, %arg1: memref<8x32xbf16, #tpu.memory_space<vmem>>, %arg2: memref<32x64xbf16, #tpu.memory_space<vmem>>, %arg3: memref<1x64xf32, #tpu.memory_space<vmem>>, %arg4: memref<64x32xbf16, #tpu.memory_space<vmem>>, %arg5: memref<1x32xf32, #tpu.memory_space<vmem>>, %arg6: memref<1x32xf32, #tpu.memory_space<vmem>>, %arg7: memref<1x32xf32, #tpu.memory_space<vmem>>, %arg8: memref<8x32xbf16, #tpu.memory_space<vmem>>) attributes {dimension_semantics = [#tpu.dimension_semantics<parallel>], iteration_bounds = array<i64: 2>, scalar_prefetch = 0 : i64, scratch_operands = 0 : i64, tpu.core_type = #tpu.core_type<tc>, window_params = [{transform_indices = @transform_0, window_bounds = array<i64: 8, 32>}, {pipeline_mode = #tpu.pipeline_mode<synchronous>, transform_indices = @transform_1, window_bounds = array<i64: 32, 64>}, {pipeline_mode = #tpu.pipeline_mode<synchronous>, transform_indices = @transform_2, window_bounds = array<i64: 1, 64>}, {pipeline_mode = #tpu.pipeline_mode<synchronous>, transform_indices = @transform_3, window_bounds = array<i64: 64, 32>}, {pipeline_mode = #tpu.pipeline_mode<synchronous>, transform_indices = @transform_4, window_bounds = array<i64: 1, 32>}, {pipeline_mode = #tpu.pipeline_mode<synchronous>, transform_indices = @transform_5, window_bounds = array<i64: 1, 32>}, {pipeline_mode = #tpu.pipeline_mode<synchronous>, transform_indices = @transform_6, window_bounds = array<i64: 1, 32>}, {transform_indices = @transform_7, window_bounds = array<i64: 8, 32>}]} {
    %c0 = arith.constant 0 : index
    %c0_0 = arith.constant 0 : index
    %0 = vector.load %arg1[%c0, %c0_0] : memref<8x32xbf16, #tpu.memory_space<vmem>>, vector<8x32xbf16>
    %c0_1 = arith.constant 0 : index
    %c0_2 = arith.constant 0 : index
    %1 = vector.load %arg2[%c0_1, %c0_2] : memref<32x64xbf16, #tpu.memory_space<vmem>>, vector<32x64xbf16>
    %cst = arith.constant dense<0.000000e+00> : vector<8x64xf32>
    %2 = tpu.matmul %0, %1, %cst {dimension_numbers = #tpu.dot_dimension_numbers<[1], [0], [0], [1], [0, 0, 1, 1], [], []>} : vector<8x32xbf16>, vector<32x64xbf16>, vector<8x64xf32> -> vector<8x64xf32>
    %c0_3 = arith.constant 0 : index
    %c0_4 = arith.constant 0 : index
    %3 = vector.load %arg3[%c0_3, %c0_4] : memref<1x64xf32, #tpu.memory_space<vmem>>, vector<1x64xf32>
    %4 = vector.broadcast %3 : vector<1x64xf32> to vector<8x64xf32>
    %5 = arith.addf %2, %4 : vector<8x64xf32>
    %cst_5 = arith.constant 0.000000e+00 : f32
    %6 = vector.broadcast %cst_5 : f32 to vector<8x64xf32>
    %7 = arith.maximumf %5, %6 : vector<8x64xf32>
    %8 = arith.truncf %7 : vector<8x64xf32> to vector<8x64xbf16>
    %c0_6 = arith.constant 0 : index
    %c0_7 = arith.constant 0 : index
    %9 = vector.load %arg4[%c0_6, %c0_7] : memref<64x32xbf16, #tpu.memory_space<vmem>>, vector<64x32xbf16>
    %cst_8 = arith.constant dense<0.000000e+00> : vector<8x32xf32>
    %10 = tpu.matmul %8, %9, %cst_8 {dimension_numbers = #tpu.dot_dimension_numbers<[1], [0], [0], [1], [0, 0, 1, 1], [], []>} : vector<8x64xbf16>, vector<64x32xbf16>, vector<8x32xf32> -> vector<8x32xf32>
    %c0_9 = arith.constant 0 : index
    %c0_10 = arith.constant 0 : index
    %11 = vector.load %arg5[%c0_9, %c0_10] : memref<1x32xf32, #tpu.memory_space<vmem>>, vector<1x32xf32>
    %12 = vector.broadcast %11 : vector<1x32xf32> to vector<8x32xf32>
    %13 = arith.addf %10, %12 : vector<8x32xf32>
    %14 = arith.extf %0 : vector<8x32xbf16> to vector<8x32xf32>
    %15 = arith.addf %13, %14 : vector<8x32xf32>
    %c0_11 = arith.constant 0 : index
    %c0_12 = arith.constant 0 : index
    %16 = vector.load %arg6[%c0_11, %c0_12] : memref<1x32xf32, #tpu.memory_space<vmem>>, vector<1x32xf32>
    %c0_13 = arith.constant 0 : index
    %c0_14 = arith.constant 0 : index
    %17 = vector.load %arg7[%c0_13, %c0_14] : memref<1x32xf32, #tpu.memory_space<vmem>>, vector<1x32xf32>
    %cst_15 = arith.constant dense<0.000000e+00> : vector<8xf32>
    %18 = vector.multi_reduction <add>, %15, %cst_15 [1] : vector<8x32xf32> to vector<8xf32>
    %19 = vector.shape_cast %18 : vector<8xf32> to vector<8x1xf32>
    %cst_16 = arith.constant 3.200000e+01 : f32
    %20 = vector.broadcast %cst_16 : f32 to vector<8x1xf32>
    %21 = arith.divf %19, %20 : vector<8x1xf32>
    %22 = vector.broadcast %21 : vector<8x1xf32> to vector<8x32xf32>
    %23 = arith.subf %15, %22 : vector<8x32xf32>
    %24 = arith.mulf %23, %23 : vector<8x32xf32>
    %cst_17 = arith.constant dense<0.000000e+00> : vector<8xf32>
    %25 = vector.multi_reduction <add>, %24, %cst_17 [1] : vector<8x32xf32> to vector<8xf32>
    %26 = vector.shape_cast %25 : vector<8xf32> to vector<8x1xf32>
    %cst_18 = arith.constant 3.200000e+01 : f32
    %27 = vector.broadcast %cst_18 : f32 to vector<8x1xf32>
    %28 = arith.divf %26, %27 : vector<8x1xf32>
    %cst_19 = arith.constant 9.99999974E-6 : f32
    %29 = vector.broadcast %cst_19 : f32 to vector<8x1xf32>
    %30 = arith.addf %28, %29 : vector<8x1xf32>
    %31 = math.rsqrt %30 : vector<8x1xf32>
    %32 = vector.broadcast %31 : vector<8x1xf32> to vector<8x32xf32>
    %33 = arith.mulf %23, %32 : vector<8x32xf32>
    %34 = vector.broadcast %16 : vector<1x32xf32> to vector<8x32xf32>
    %35 = arith.mulf %33, %34 : vector<8x32xf32>
    %36 = vector.broadcast %17 : vector<1x32xf32> to vector<8x32xf32>
    %37 = arith.addf %35, %36 : vector<8x32xf32>
    %38 = arith.truncf %37 : vector<8x32xf32> to vector<8x32xbf16>
    %c0_20 = arith.constant 0 : index
    %c0_21 = arith.constant 0 : index
    %39 = vector.load %arg8[%c0_20, %c0_21] : memref<8x32xbf16, #tpu.memory_space<vmem>>, vector<8x32xbf16>
    tpu.vector_store %arg8[%c0_20, %c0_21], %38 {strides = array<i32>} : memref<8x32xbf16, #tpu.memory_space<vmem>>, vector<8x32xbf16>,
    return
  }
  func.func @transform_0(%arg0: i32) -> (i32, i32) {
    %c0_i32 = arith.constant 0 : i32
    %c0_i32_0 = arith.constant 0 : i32
    return %arg0, %c0_i32 : i32, i32
  }
  func.func @transform_1(%arg0: i32) -> (i32, i32) {
    %c0_i32 = arith.constant 0 : i32
    %c0_i32_0 = arith.constant 0 : i32
    %c0_i32_1 = arith.constant 0 : i32
    return %c0_i32, %c0_i32_0 : i32, i32
  }
  func.func @transform_2(%arg0: i32) -> (i32, i32) {
    %c0_i32 = arith.constant 0 : i32
    %c0_i32_0 = arith.constant 0 : i32
    %c0_i32_1 = arith.constant 0 : i32
    return %c0_i32, %c0_i32_0 : i32, i32
  }
  func.func @transform_3(%arg0: i32) -> (i32, i32) {
    %c0_i32 = arith.constant 0 : i32
    %c0_i32_0 = arith.constant 0 : i32
    %c0_i32_1 = arith.constant 0 : i32
    return %c0_i32, %c0_i32_0 : i32, i32
  }
  func.func @transform_4(%arg0: i32) -> (i32, i32) {
    %c0_i32 = arith.constant 0 : i32
    %c0_i32_0 = arith.constant 0 : i32
    %c0_i32_1 = arith.constant 0 : i32
    return %c0_i32, %c0_i32_0 : i32, i32
  }
  func.func @transform_5(%arg0: i32) -> (i32, i32) {
    %c0_i32 = arith.constant 0 : i32
    %c0_i32_0 = arith.constant 0 : i32
    %c0_i32_1 = arith.constant 0 : i32
    return %c0_i32, %c0_i32_0 : i32, i32
  }
  func.func @transform_6(%arg0: i32) -> (i32, i32) {
    %c0_i32 = arith.constant 0 : i32
    %c0_i32_0 = arith.constant 0 : i32
    %c0_i32_1 = arith.constant 0 : i32
    return %c0_i32, %c0_i32_0 : i32, i32
  }
  func.func @transform_7(%arg0: i32) -> (i32, i32) {
    %c0_i32 = arith.constant 0 : i32
    %c0_i32_0 = arith.constant 0 : i32
    return %arg0, %c0_i32 : i32, i32
  }
}

module attributes {stable_mosaic.version = 11 : i64} {
  func.func @_linear_kernel(%arg0: i32, %arg1: memref<8x32xbf16, #tpu.memory_space<vmem>>, %arg2: memref<32x128xbf16, #tpu.memory_space<vmem>>, %arg3: memref<1x128xf32, #tpu.memory_space<vmem>>, %arg4: memref<8x128xf32, #tpu.memory_space<vmem>>) attributes {dimension_semantics = [#tpu.dimension_semantics<parallel>], iteration_bounds = array<i64: 2>, scalar_prefetch = 0 : i64, scratch_operands = 0 : i64, tpu.core_type = #tpu.core_type<tc>, window_params = [{transform_indices = @transform_0, window_bounds = array<i64: 8, 32>}, {pipeline_mode = #tpu.pipeline_mode<synchronous>, transform_indices = @transform_1, window_bounds = array<i64: 32, 128>}, {pipeline_mode = #tpu.pipeline_mode<synchronous>, transform_indices = @transform_2, window_bounds = array<i64: 1, 128>}, {transform_indices = @transform_3, window_bounds = array<i64: 8, 128>}]} {
    %c0 = arith.constant 0 : index
    %c0_0 = arith.constant 0 : index
    %0 = vector.load %arg1[%c0, %c0_0] : memref<8x32xbf16, #tpu.memory_space<vmem>>, vector<8x32xbf16>
    %c0_1 = arith.constant 0 : index
    %c0_2 = arith.constant 0 : index
    %1 = vector.load %arg2[%c0_1, %c0_2] : memref<32x128xbf16, #tpu.memory_space<vmem>>, vector<32x128xbf16>
    %cst = arith.constant dense<0.000000e+00> : vector<8x128xf32>
    %2 = tpu.matmul %0, %1, %cst {dimension_numbers = #tpu.dot_dimension_numbers<[1], [0], [0], [1], [0, 0, 1, 1], [], []>} : vector<8x32xbf16>, vector<32x128xbf16>, vector<8x128xf32> -> vector<8x128xf32>
    %c0_3 = arith.constant 0 : index
    %c0_4 = arith.constant 0 : index
    %3 = vector.load %arg3[%c0_3, %c0_4] : memref<1x128xf32, #tpu.memory_space<vmem>>, vector<1x128xf32>
    %4 = vector.broadcast %3 : vector<1x128xf32> to vector<8x128xf32>
    %5 = arith.addf %2, %4 : vector<8x128xf32>
    %c0_5 = arith.constant 0 : index
    %c0_6 = arith.constant 0 : index
    %6 = vector.load %arg4[%c0_5, %c0_6] : memref<8x128xf32, #tpu.memory_space<vmem>>, vector<8x128xf32>
    tpu.vector_store %arg4[%c0_5, %c0_6], %5 {strides = array<i32>} : memref<8x128xf32, #tpu.memory_space<vmem>>, vector<8x128xf32>,
    return
  }
  func.func @transform_0(%arg0: i32) -> (i32, i32) {
    %c0_i32 = arith.constant 0 : i32
    %c0_i32_0 = arith.constant 0 : i32
    return %arg0, %c0_i32 : i32, i32
  }
  func.func @transform_1(%arg0: i32) -> (i32, i32) {
    %c0_i32 = arith.constant 0 : i32
    %c0_i32_0 = arith.constant 0 : i32
    %c0_i32_1 = arith.constant 0 : i32
    return %c0_i32, %c0_i32_0 : i32, i32
  }
  func.func @transform_2(%arg0: i32) -> (i32, i32) {
    %c0_i32 = arith.constant 0 : i32
    %c0_i32_0 = arith.constant 0 : i32
    %c0_i32_1 = arith.constant 0 : i32
    return %c0_i32, %c0_i32_0 : i32, i32
  }
  func.func @transform_3(%arg0: i32) -> (i32, i32) {
    %c0_i32 = arith.constant 0 : i32
    %c0_i32_0 = arith.constant 0 : i32
    return %arg0, %c0_i32 : i32, i32
  }
}

</mosaic_0001>

<llo_original>
// kernel: transformer_forward.6
$region0: #{transformer_forward.6}
  #allocation0 [shape = 'u32[]', space=smem, size = 0x4, offset = 0x4, fixed_abs, tag = 'smem constant byte address 0x4 - core index']
  #allocation1 [shape = 'u32[72,128]{1,0:T(1,128)}', space=vmem, size = 0x9000, scoped, tag = 'internal scratch']
  %s0 = inlined_call_operand.vmem [shape: f32[16,4], index: 0, kind: input, shape index: {}]
  %s1 = inlined_call_operand.vmem [shape: f32[8,32], index: 1, kind: input, shape index: {}]
  %s2 = inlined_call_operand.vmem [shape: bf16[4,32], index: 2, kind: input, shape index: {}]
  %s3 = inlined_call_operand.vmem [shape: f32[1,32], index: 3, kind: input, shape index: {}]
  %s4 = inlined_call_operand.vmem [shape: bf16[16,32], index: 4, kind: output, shape index: {}]
  %s5 = sld [smem:[#allocation0]]
  $region49: #{transformer_forward.6} parent=0
    _
  %s7 = ssub.s32 1, %s5
  %s8 = scalar_select 0, %s7, %s5
  loop: start=0, step=1, limit=4
  $region2: #{transformer_forward.6} parent=0 // loop_pre_header
    _
  $region3: #{transformer_forward.6} parent=0 // loop_header
    %s10 = sphi 0, %s14
    %p11 = scmp.ge.s32.totalorder %s10, 4
    %s20 = sphi 0, %s22
    %s23 = sphi 0, %s20
    %s24 = sphi 0, %s23
    %s40 = sphi 0, %s24
    %s44 = sphi 0, %s44
    %s46 = sphi 0, %s44
    %s47 = sphi 0, %s46
    %s61 = sphi 0, %s47
    %s65 = sphi 0, %s65
    %s67 = sphi 0, %s65
    %s68 = sphi 0, %s67
    %s82 = sphi 0, %s68
    %s86 = sphi 0, %s86
    %s88 = sphi 0, %s86
    %s89 = sphi 0, %s88
    %s103 = sphi 0, %s89
    %s109 = sphi 0, %s111
    %s112 = sphi 0, %s109
    %s113 = sphi 0, %s112
    %s129 = sphi 0, %s113
  $region4: #{transformer_forward.6} parent=0 // loop_header_branch
    %13 = sbr.rel (%p11) target = $region8
  $region5: #{transformer_forward.6} parent=0 // loop_body
    %s15 = ssub.s32 %s10, 1
    %s16 = ssub.s32 %s10, 2
    %s17 = sadd.s32 %s10, 1
    %s18 = ssub.s32 %s10, %s17
    %p19 = scmp.eq.s32.totalorder %s18, 0
    %s21 = sadd.s32 %s20, 1
    %s22 = scalar_select %p19, %s20, %s21
    %p25 = pneg %p19
    %p26 = scmp.eq.s32.totalorder %s10, 1
    %p27 = por %p25, %p26
    %p28 = scmp.ne.s32.totalorder %s20, %s23
    %p29 = scmp.eq.s32.totalorder %s10, 0
    %p30 = por %p28, %p29
    %p31 = scmp.ne.s32.totalorder %s20, %s23
    %p32 = scmp.eq.s32.totalorder %s15, 1
    %p33 = por %p31, %p32
    %p34 = scmp.ne.s32.totalorder %s23, %s24
    %p35 = scmp.eq.s32.totalorder %s15, 0
    %p36 = por %p34, %p35
    %p37 = scmp.ne.s32.totalorder %s23, %s24
    %p38 = scmp.eq.s32.totalorder %s16, 1
    %p39 = por %p37, %p38
    %p41 = scmp.ne.s32.totalorder %s24, %s40
    %p42 = scmp.eq.s32.totalorder %s16, 0
    %p43 = por %p41, %p42
    %s45 = sadd.s32 %s44, 1
    %p48 = scmp.eq.s32.totalorder %s10, 1
    %p49 = scmp.ne.s32.totalorder %s44, %s46
    %p50 = scmp.eq.s32.totalorder %s10, 0
    %p51 = por %p49, %p50
    %p52 = scmp.ne.s32.totalorder %s44, %s46
    %p53 = scmp.eq.s32.totalorder %s15, 1
    %p54 = por %p52, %p53
    %p55 = scmp.ne.s32.totalorder %s46, %s47
    %p56 = scmp.eq.s32.totalorder %s15, 0
    %p57 = por %p55, %p56
    %p58 = scmp.ne.s32.totalorder %s46, %s47
    %p59 = scmp.eq.s32.totalorder %s16, 1
    %p60 = por %p58, %p59
    %p62 = scmp.ne.s32.totalorder %s47, %s61
    %p63 = scmp.eq.s32.totalorder %s16, 0
    %p64 = por %p62, %p63
    %s66 = sadd.s32 %s65, 1
    %p69 = scmp.eq.s32.totalorder %s10, 1
    %p70 = scmp.ne.s32.totalorder %s65, %s67
    %p71 = scmp.eq.s32.totalorder %s10, 0
    %p72 = por %p70, %p71
    %p73 = scmp.ne.s32.totalorder %s65, %s67
    %p74 = scmp.eq.s32.totalorder %s15, 1
    %p75 = por %p73, %p74
    %p76 = scmp.ne.s32.totalorder %s67, %s68
    %p77 = scmp.eq.s32.totalorder %s15, 0
    %p78 = por %p76, %p77
    %p79 = scmp.ne.s32.totalorder %s67, %s68
    %p80 = scmp.eq.s32.totalorder %s16, 1
    %p81 = por %p79, %p80
    %p83 = scmp.ne.s32.totalorder %s68, %s82
    %p84 = scmp.eq.s32.totalorder %s16, 0
    %p85 = por %p83, %p84
    %s87 = sadd.s32 %s86, 1
    %p90 = scmp.eq.s32.totalorder %s10, 1
    %p91 = scmp.ne.s32.totalorder %s86, %s88
    %p92 = scmp.eq.s32.totalorder %s10, 0
    %p93 = por %p91, %p92
    %p94 = scmp.ne.s32.totalorder %s86, %s88
    %p95 = scmp.eq.s32.totalorder %s15, 1
    %p96 = por %p94, %p95
    %p97 = scmp.ne.s32.totalorder %s88, %s89
    %p98 = scmp.eq.s32.totalorder %s15, 0
    %p99 = por %p97, %p98
    %p100 = scmp.ne.s32.totalorder %s88, %s89
    %p101 = scmp.eq.s32.totalorder %s16, 1
    %p102 = por %p100, %p101
    %p104 = scmp.ne.s32.totalorder %s89, %s103
    %p105 = scmp.eq.s32.totalorder %s16, 0
    %p106 = por %p104, %p105
    %s107 = ssub.s32 %s10, %s17
    %p108 = scmp.eq.s32.totalorder %s107, 0
    %s110 = sadd.s32 %s109, 1
    %s111 = scalar_select %p108, %s109, %s110
    %p114 = pneg %p108
    %p115 = scmp.eq.s32.totalorder %s10, 1
    %p116 = por %p114, %p115
    %p117 = scmp.ne.s32.totalorder %s109, %s112
    %p118 = scmp.eq.s32.totalorder %s10, 0
    %p119 = por %p117, %p118
    %p120 = scmp.ne.s32.totalorder %s109, %s112
    %p121 = scmp.eq.s32.totalorder %s15, 1
    %p122 = por %p120, %p121
    %p123 = scmp.ne.s32.totalorder %s112, %s113
    %p124 = scmp.eq.s32.totalorder %s15, 0
    %p125 = por %p123, %p124
    %p126 = scmp.ne.s32.totalorder %s112, %s113
    %p127 = scmp.eq.s32.totalorder %s16, 1
    %p128 = por %p126, %p127
    %p130 = scmp.ne.s32.totalorder %s113, %s129
    %p131 = scmp.eq.s32.totalorder %s16, 0
    %p132 = por %p130, %p131
    %p133 = scmp.le.s32.totalorder 1, %s10
    %p134 = scmp.lt.s32.totalorder %s10, 3
    %p135 = pnand %p133, %p134
    %p136 = pneg %p135
    // Predicated region
    $region9: #{transformer_forward.6} parent=5 // pred_check
      _
    $region10: #{transformer_forward.6} parent=5 // pred_check_branch
      %138 = sbr.rel (%p135) target = $region12
    $region11: #{transformer_forward.6} parent=5 // pred_region
      %s139 = ssub.s32 %s10, 1
      // Predicated region
      $region13: #{transformer_forward.6} parent=11 // pred_check
        %p140 = pneg %p57
      $region14: #{transformer_forward.6} parent=11 // pred_check_branch
        %142 = sbr.rel (%p140) target = $region16
      $region15: #{transformer_forward.6} parent=11 // pred_region
        _
      $region16: #{transformer_forward.6} parent=11 // pred_fallthru
        _
      // Predicated region
      $region17: #{transformer_forward.6} parent=11 // pred_check
        %p143 = pneg %p78
      $region18: #{transformer_forward.6} parent=11 // pred_check_branch
        %145 = sbr.rel (%p143) target = $region20
      $region19: #{transformer_forward.6} parent=11 // pred_region
        _
      $region20: #{transformer_forward.6} parent=11 // pred_fallthru
        _
      // Predicated region
      $region21: #{transformer_forward.6} parent=11 // pred_check
        %p146 = pneg %p99
      $region22: #{transformer_forward.6} parent=11 // pred_check_branch
        %148 = sbr.rel (%p146) target = $region24
      $region23: #{transformer_forward.6} parent=11 // pred_region
        _
      $region24: #{transformer_forward.6} parent=11 // pred_fallthru
        _
    $region12: #{transformer_forward.6} parent=5 // pred_fallthru
      _
    %p149 = scmp.lt.s32.totalorder %s10, 2
    // Predicated region
    $region25: #{transformer_forward.6} parent=5 // pred_check
      %p150 = pneg %p149
    $region26: #{transformer_forward.6} parent=5 // pred_check_branch
      %152 = sbr.rel (%p150) target = $region28
    $region27: #{transformer_forward.6} parent=5 // pred_region
      // Predicated region
      $region29: #{transformer_forward.6} parent=27 // pred_check
        %p153 = pneg %p30
      $region30: #{transformer_forward.6} parent=27 // pred_check_branch
        %155 = sbr.rel (%p153) target = $region32
      $region31: #{transformer_forward.6} parent=27 // pred_region
        %p156 = scmp.lt.s32.totalorder %s10, 1
        %s157 = scalar_select %p156, %s10, 1
        %s158 = smul.addr %s157, 8
        %s159 = scalar_lea.vmem %s0, %s158
      $region32: #{transformer_forward.6} parent=27 // pred_fallthru
        _
    $region28: #{transformer_forward.6} parent=5 // pred_fallthru
      _
    %p160 = scmp.le.s32.totalorder 1, %s10
    %p161 = scmp.lt.s32.totalorder %s10, 3
    %p162 = pnand %p160, %p161
    %p163 = pneg %p162
    // Predicated region
    $region33: #{transformer_forward.6} parent=5 // pred_check
      _
    $region34: #{transformer_forward.6} parent=5 // pred_check_branch
      %165 = sbr.rel (%p162) target = $region36
    $region35: #{transformer_forward.6} parent=5 // pred_region
      %s166 = ssub.s32 %s10, 1
      %p167 = scmp.lt.s32.totalorder %s15, 1
      %s168 = scalar_select %p167, %s15, 1
      %s169 = smul.addr %s168, 8
      %s170 = scalar_lea.vmem %s0, %s169
      %p171 = pneg %p36
      %p172 = pneg %p33
      %p173 = pneg %p57
      %p174 = pneg %p54
      %p175 = pneg %p78
      %p176 = pneg %p75
      %p177 = pneg %p99
      %p178 = pneg %p96
      %p179 = pneg %p125
      %p180 = pneg %p122
      %p181 = scmp.lt.s32.totalorder %s15, 1
      %s182 = scalar_select %p181, %s15, 1
      %s183 = smul.addr %s182, 4
      %s184 = scalar_lea.vmem %s4, %s183
      %p185 = scmp.lt.s32.totalorder %s15, 1
      %s186 = scalar_select %p185, %s15, 1
      %s187 = smul.addr %s186, 8
      %s188 = scalar_lea.vmem %s0, %s187
      %p189 = scmp.lt.s32.totalorder %s15, 1
      %s190 = scalar_select %p189, %s15, 1
      %s191 = smul.addr %s190, 4
      %s192 = scalar_lea.vmem %s4, %s191
      %v194 = vld [vmem:[%s188] sm:$0xff]
      %v195 = vpack.c.bf16 %v194, %v194
      %v196 = vld [vmem:[%s2] sm:$0x3]
      %v197 = vld [vmem:[%s3] sm:$0x1]
      %v199 = vperm.slane %v197, 0
      %vm201 = vcmask 31744
      %v203 = vsel %vm201, %v195, 0
      %vm205 = vcmask 1041408
      %v207 = vsel %vm205, %v196, 0
      %209 = vmatpush.bf16.msra.mxu0 0
      %210 = vmatpush.bf16.msra.mxu0 0
      %211 = vmatpush.bf16.msra.mxu0 0
      %212 = vmatpush.bf16.msra.mxu0 0
      %213 = vmatpush.bf16.msra.mxu0 0
      %214 = vmatpush.bf16.msra.mxu0 0
      %215 = vmatpush.bf16.msra.mxu0 0
      %216 = vmatpush.bf16.msra.mxu0 %v207
      %217 = vmatmul.bf16.gmra.mxu0 %v203
      %v218 = vpop.f32.mrf.mxu0
      %v219 = vadd.f32 %v199, %v218
      %v220 = vpop.f32.mrf.mxu0
      %221 = vdwg.mxu0
      %v222 = vmul.f32 %v219, 5.656854
      %v223 = vld [vmem:[%s1] sm:$0xff]
      %v224 = vadd.f32 %v222, %v223
      %v225 = vpack.c.bf16 %v224, %v224
      %vm226 = vcmask 257024
      %227 = vst.msk [vmem:[%s192] sm:$0xf] %vm226, %v225
      %p228 = scmp.lt.s32.totalorder %s15, 1
      %s229 = scalar_select %p228, %s15, 1
      %s230 = smul.addr %s229, 4
      %s231 = scalar_lea.vmem %s4, %s230
      // Predicated region
      $region37: #{transformer_forward.6} parent=35 // pred_check
        %p232 = pneg %p122
      $region38: #{transformer_forward.6} parent=35 // pred_check_branch
        %234 = sbr.rel (%p232) target = $region40
      $region39: #{transformer_forward.6} parent=35 // pred_region
        _
      $region40: #{transformer_forward.6} parent=35 // pred_fallthru
        _
    $region36: #{transformer_forward.6} parent=5 // pred_fallthru
      _
    %p235 = scmp.le.s32.totalorder 2, %s10
    // Predicated region
    $region41: #{transformer_forward.6} parent=5 // pred_check
      %p236 = pneg %p235
    $region42: #{transformer_forward.6} parent=5 // pred_check_branch
      %238 = sbr.rel (%p236) target = $region44
    $region43: #{transformer_forward.6} parent=5 // pred_region
      %s239 = ssub.s32 %s10, 2
      // Predicated region
      $region45: #{transformer_forward.6} parent=43 // pred_check
        %p240 = pneg %p128
      $region46: #{transformer_forward.6} parent=43 // pred_check_branch
        %242 = sbr.rel (%p240) target = $region48
      $region47: #{transformer_forward.6} parent=43 // pred_region
        %p243 = scmp.lt.s32.totalorder %s16, 1
        %s244 = scalar_select %p243, %s16, 1
        %s245 = smul.addr %s244, 4
        %s246 = scalar_lea.vmem %s4, %s245
      $region48: #{transformer_forward.6} parent=43 // pred_fallthru
        _
    $region44: #{transformer_forward.6} parent=5 // pred_fallthru
      _
  $region6: #{transformer_forward.6} parent=0 // loop_footer
    %s14 = sadd.s32 1, %s10
  $region7: #{transformer_forward.6} parent=0 // loop_footer_branch
    %9 = sbr.rel target = $region3
  $region8: #{transformer_forward.6} parent=0 // loop_exit
    _

// kernel: transformer_forward.7
$region0: #{transformer_forward.7}
  #allocation0 [shape = 'u32[]', space=smem, size = 0x4, offset = 0x4, fixed_abs, tag = 'smem constant byte address 0x4 - core index']
  #allocation1 [shape = 'u32[72,128]{1,0:T(1,128)}', space=vmem, size = 0x9000, scoped, tag = 'internal scratch']
  %s0 = inlined_call_operand.vmem [shape: bf16[16,32], index: 0, kind: input, shape index: {}]
  %s1 = inlined_call_operand.vmem [shape: bf16[32,96], index: 1, kind: input, shape index: {}]
  %s2 = inlined_call_operand.vmem [shape: f32[1,96], index: 2, kind: input, shape index: {}]
  %s3 = inlined_call_operand.vmem [shape: bf16[32,32], index: 3, kind: input, shape index: {}]
  %s4 = inlined_call_operand.vmem [shape: f32[1,32], index: 4, kind: input, shape index: {}]
  %s5 = inlined_call_operand.vmem [shape: f32[1,32], index: 5, kind: input, shape index: {}]
  %s6 = inlined_call_operand.vmem [shape: f32[1,32], index: 6, kind: input, shape index: {}]
  %s7 = inlined_call_operand.vmem [shape: bf16[16,32], index: 7, kind: output, shape index: {}]
  %s8 = sld [smem:[#allocation0]]
  $region61: #{transformer_forward.7} parent=0
    _
  %s10 = ssub.s32 1, %s8
  %s11 = scalar_select 0, %s10, %s8
  loop: start=0, step=1, limit=4
  $region2: #{transformer_forward.7} parent=0 // loop_pre_header
    _
  $region3: #{transformer_forward.7} parent=0 // loop_header
    %s13 = sphi 0, %s17
    %p14 = scmp.ge.s32.totalorder %s13, 4
    %s23 = sphi 0, %s25
    %s26 = sphi 0, %s23
    %s27 = sphi 0, %s26
    %s43 = sphi 0, %s27
    %s47 = sphi 0, %s47
    %s49 = sphi 0, %s47
    %s50 = sphi 0, %s49
    %s64 = sphi 0, %s50
    %s68 = sphi 0, %s68
    %s70 = sphi 0, %s68
    %s71 = sphi 0, %s70
    %s85 = sphi 0, %s71
    %s89 = sphi 0, %s89
    %s91 = sphi 0, %s89
    %s92 = sphi 0, %s91
    %s106 = sphi 0, %s92
    %s110 = sphi 0, %s110
    %s112 = sphi 0, %s110
    %s113 = sphi 0, %s112
    %s127 = sphi 0, %s113
    %s131 = sphi 0, %s131
    %s133 = sphi 0, %s131
    %s134 = sphi 0, %s133
    %s148 = sphi 0, %s134
    %s152 = sphi 0, %s152
    %s154 = sphi 0, %s152
    %s155 = sphi 0, %s154
    %s169 = sphi 0, %s155
    %s175 = sphi 0, %s177
    %s178 = sphi 0, %s175
    %s179 = sphi 0, %s178
    %s195 = sphi 0, %s179
  $region4: #{transformer_forward.7} parent=0 // loop_header_branch
    %16 = sbr.rel (%p14) target = $region8
  $region5: #{transformer_forward.7} parent=0 // loop_body
    %s18 = ssub.s32 %s13, 1
    %s19 = ssub.s32 %s13, 2
    %s20 = sadd.s32 %s13, 1
    %s21 = ssub.s32 %s13, %s20
    %p22 = scmp.eq.s32.totalorder %s21, 0
    %s24 = sadd.s32 %s23, 1
    %s25 = scalar_select %p22, %s23, %s24
    %p28 = pneg %p22
    %p29 = scmp.eq.s32.totalorder %s13, 1
    %p30 = por %p28, %p29
    %p31 = scmp.ne.s32.totalorder %s23, %s26
    %p32 = scmp.eq.s32.totalorder %s13, 0
    %p33 = por %p31, %p32
    %p34 = scmp.ne.s32.totalorder %s23, %s26
    %p35 = scmp.eq.s32.totalorder %s18, 1
    %p36 = por %p34, %p35
    %p37 = scmp.ne.s32.totalorder %s26, %s27
    %p38 = scmp.eq.s32.totalorder %s18, 0
    %p39 = por %p37, %p38
    %p40 = scmp.ne.s32.totalorder %s26, %s27
    %p41 = scmp.eq.s32.totalorder %s19, 1
    %p42 = por %p40, %p41
    %p44 = scmp.ne.s32.totalorder %s27, %s43
    %p45 = scmp.eq.s32.totalorder %s19, 0
    %p46 = por %p44, %p45
    %s48 = sadd.s32 %s47, 1
    %p51 = scmp.eq.s32.totalorder %s13, 1
    %p52 = scmp.ne.s32.totalorder %s47, %s49
    %p53 = scmp.eq.s32.totalorder %s13, 0
    %p54 = por %p52, %p53
    %p55 = scmp.ne.s32.totalorder %s47, %s49
    %p56 = scmp.eq.s32.totalorder %s18, 1
    %p57 = por %p55, %p56
    %p58 = scmp.ne.s32.totalorder %s49, %s50
    %p59 = scmp.eq.s32.totalorder %s18, 0
    %p60 = por %p58, %p59
    %p61 = scmp.ne.s32.totalorder %s49, %s50
    %p62 = scmp.eq.s32.totalorder %s19, 1
    %p63 = por %p61, %p62
    %p65 = scmp.ne.s32.totalorder %s50, %s64
    %p66 = scmp.eq.s32.totalorder %s19, 0
    %p67 = por %p65, %p66
    %s69 = sadd.s32 %s68, 1
    %p72 = scmp.eq.s32.totalorder %s13, 1
    %p73 = scmp.ne.s32.totalorder %s68, %s70
    %p74 = scmp.eq.s32.totalorder %s13, 0
    %p75 = por %p73, %p74
    %p76 = scmp.ne.s32.totalorder %s68, %s70
    %p77 = scmp.eq.s32.totalorder %s18, 1
    %p78 = por %p76, %p77
    %p79 = scmp.ne.s32.totalorder %s70, %s71
    %p80 = scmp.eq.s32.totalorder %s18, 0
    %p81 = por %p79, %p80
    %p82 = scmp.ne.s32.totalorder %s70, %s71
    %p83 = scmp.eq.s32.totalorder %s19, 1
    %p84 = por %p82, %p83
    %p86 = scmp.ne.s32.totalorder %s71, %s85
    %p87 = scmp.eq.s32.totalorder %s19, 0
    %p88 = por %p86, %p87
    %s90 = sadd.s32 %s89, 1
    %p93 = scmp.eq.s32.totalorder %s13, 1
    %p94 = scmp.ne.s32.totalorder %s89, %s91
    %p95 = scmp.eq.s32.totalorder %s13, 0
    %p96 = por %p94, %p95
    %p97 = scmp.ne.s32.totalorder %s89, %s91
    %p98 = scmp.eq.s32.totalorder %s18, 1
    %p99 = por %p97, %p98
    %p100 = scmp.ne.s32.totalorder %s91, %s92
    %p101 = scmp.eq.s32.totalorder %s18, 0
    %p102 = por %p100, %p101
    %p103 = scmp.ne.s32.totalorder %s91, %s92
    %p104 = scmp.eq.s32.totalorder %s19, 1
    %p105 = por %p103, %p104
    %p107 = scmp.ne.s32.totalorder %s92, %s106
    %p108 = scmp.eq.s32.totalorder %s19, 0
    %p109 = por %p107, %p108
    %s111 = sadd.s32 %s110, 1
    %p114 = scmp.eq.s32.totalorder %s13, 1
    %p115 = scmp.ne.s32.totalorder %s110, %s112
    %p116 = scmp.eq.s32.totalorder %s13, 0
    %p117 = por %p115, %p116
    %p118 = scmp.ne.s32.totalorder %s110, %s112
    %p119 = scmp.eq.s32.totalorder %s18, 1
    %p120 = por %p118, %p119
    %p121 = scmp.ne.s32.totalorder %s112, %s113
    %p122 = scmp.eq.s32.totalorder %s18, 0
    %p123 = por %p121, %p122
    %p124 = scmp.ne.s32.totalorder %s112, %s113
    %p125 = scmp.eq.s32.totalorder %s19, 1
    %p126 = por %p124, %p125
    %p128 = scmp.ne.s32.totalorder %s113, %s127
    %p129 = scmp.eq.s32.totalorder %s19, 0
    %p130 = por %p128, %p129
    %s132 = sadd.s32 %s131, 1
    %p135 = scmp.eq.s32.totalorder %s13, 1
    %p136 = scmp.ne.s32.totalorder %s131, %s133
    %p137 = scmp.eq.s32.totalorder %s13, 0
    %p138 = por %p136, %p137
    %p139 = scmp.ne.s32.totalorder %s131, %s133
    %p140 = scmp.eq.s32.totalorder %s18, 1
    %p141 = por %p139, %p140
    %p142 = scmp.ne.s32.totalorder %s133, %s134
    %p143 = scmp.eq.s32.totalorder %s18, 0
    %p144 = por %p142, %p143
    %p145 = scmp.ne.s32.totalorder %s133, %s134
    %p146 = scmp.eq.s32.totalorder %s19, 1
    %p147 = por %p145, %p146
    %p149 = scmp.ne.s32.totalorder %s134, %s148
    %p150 = scmp.eq.s32.totalorder %s19, 0
    %p151 = por %p149, %p150
    %s153 = sadd.s32 %s152, 1
    %p156 = scmp.eq.s32.totalorder %s13, 1
    %p157 = scmp.ne.s32.totalorder %s152, %s154
    %p158 = scmp.eq.s32.totalorder %s13, 0
    %p159 = por %p157, %p158
    %p160 = scmp.ne.s32.totalorder %s152, %s154
    %p161 = scmp.eq.s32.totalorder %s18, 1
    %p162 = por %p160, %p161
    %p163 = scmp.ne.s32.totalorder %s154, %s155
    %p164 = scmp.eq.s32.totalorder %s18, 0
    %p165 = por %p163, %p164
    %p166 = scmp.ne.s32.totalorder %s154, %s155
    %p167 = scmp.eq.s32.totalorder %s19, 1
    %p168 = por %p166, %p167
    %p170 = scmp.ne.s32.totalorder %s155, %s169
    %p171 = scmp.eq.s32.totalorder %s19, 0
    %p172 = por %p170, %p171
    %s173 = ssub.s32 %s13, %s20
    %p174 = scmp.eq.s32.totalorder %s173, 0
    %s176 = sadd.s32 %s175, 1
    %s177 = scalar_select %p174, %s175, %s176
    %p180 = pneg %p174
    %p181 = scmp.eq.s32.totalorder %s13, 1
    %p182 = por %p180, %p181
    %p183 = scmp.ne.s32.totalorder %s175, %s178
    %p184 = scmp.eq.s32.totalorder %s13, 0
    %p185 = por %p183, %p184
    %p186 = scmp.ne.s32.totalorder %s175, %s178
    %p187 = scmp.eq.s32.totalorder %s18, 1
    %p188 = por %p186, %p187
    %p189 = scmp.ne.s32.totalorder %s178, %s179
    %p190 = scmp.eq.s32.totalorder %s18, 0
    %p191 = por %p189, %p190
    %p192 = scmp.ne.s32.totalorder %s178, %s179
    %p193 = scmp.eq.s32.totalorder %s19, 1
    %p194 = por %p192, %p193
    %p196 = scmp.ne.s32.totalorder %s179, %s195
    %p197 = scmp.eq.s32.totalorder %s19, 0
    %p198 = por %p196, %p197
    %p199 = scmp.le.s32.totalorder 1, %s13
    %p200 = scmp.lt.s32.totalorder %s13, 3
    %p201 = pnand %p199, %p200
    %p202 = pneg %p201
    // Predicated region
    $region9: #{transformer_forward.7} parent=5 // pred_check
      _
    $region10: #{transformer_forward.7} parent=5 // pred_check_branch
      %204 = sbr.rel (%p201) target = $region12
    $region11: #{transformer_forward.7} parent=5 // pred_region
      %s205 = ssub.s32 %s13, 1
      // Predicated region
      $region13: #{transformer_forward.7} parent=11 // pred_check
        %p206 = pneg %p60
      $region14: #{transformer_forward.7} parent=11 // pred_check_branch
        %208 = sbr.rel (%p206) target = $region16
      $region15: #{transformer_forward.7} parent=11 // pred_region
        _
      $region16: #{transformer_forward.7} parent=11 // pred_fallthru
        _
      // Predicated region
      $region17: #{transformer_forward.7} parent=11 // pred_check
        %p209 = pneg %p81
      $region18: #{transformer_forward.7} parent=11 // pred_check_branch
        %211 = sbr.rel (%p209) target = $region20
      $region19: #{transformer_forward.7} parent=11 // pred_region
        _
      $region20: #{transformer_forward.7} parent=11 // pred_fallthru
        _
      // Predicated region
      $region21: #{transformer_forward.7} parent=11 // pred_check
        %p212 = pneg %p102
      $region22: #{transformer_forward.7} parent=11 // pred_check_branch
        %214 = sbr.rel (%p212) target = $region24
      $region23: #{transformer_forward.7} parent=11 // pred_region
        _
      $region24: #{transformer_forward.7} parent=11 // pred_fallthru
        _
      // Predicated region
      $region25: #{transformer_forward.7} parent=11 // pred_check
        %p215 = pneg %p123
      $region26: #{transformer_forward.7} parent=11 // pred_check_branch
        %217 = sbr.rel (%p215) target = $region28
      $region27: #{transformer_forward.7} parent=11 // pred_region
        _
      $region28: #{transformer_forward.7} parent=11 // pred_fallthru
        _
      // Predicated region
      $region29: #{transformer_forward.7} parent=11 // pred_check
        %p218 = pneg %p144
      $region30: #{transformer_forward.7} parent=11 // pred_check_branch
        %220 = sbr.rel (%p218) target = $region32
      $region31: #{transformer_forward.7} parent=11 // pred_region
        _
      $region32: #{transformer_forward.7} parent=11 // pred_fallthru
        _
      // Predicated region
      $region33: #{transformer_forward.7} parent=11 // pred_check
        %p221 = pneg %p165
      $region34: #{transformer_forward.7} parent=11 // pred_check_branch
        %223 = sbr.rel (%p221) target = $region36
      $region35: #{transformer_forward.7} parent=11 // pred_region
        _
      $region36: #{transformer_forward.7} parent=11 // pred_fallthru
        _
    $region12: #{transformer_forward.7} parent=5 // pred_fallthru
      _
    %p224 = scmp.lt.s32.totalorder %s13, 2
    // Predicated region
    $region37: #{transformer_forward.7} parent=5 // pred_check
      %p225 = pneg %p224
    $region38: #{transformer_forward.7} parent=5 // pred_check_branch
      %227 = sbr.rel (%p225) target = $region40
    $region39: #{transformer_forward.7} parent=5 // pred_region
      // Predicated region
      $region41: #{transformer_forward.7} parent=39 // pred_check
        %p228 = pneg %p33
      $region42: #{transformer_forward.7} parent=39 // pred_check_branch
        %230 = sbr.rel (%p228) target = $region44
      $region43: #{transformer_forward.7} parent=39 // pred_region
        %p231 = scmp.lt.s32.totalorder %s13, 1
        %s232 = scalar_select %p231, %s13, 1
        %s233 = smul.addr %s232, 4
        %s234 = scalar_lea.vmem %s0, %s233
      $region44: #{transformer_forward.7} parent=39 // pred_fallthru
        _
    $region40: #{transformer_forward.7} parent=5 // pred_fallthru
      _
    %p235 = scmp.le.s32.totalorder 1, %s13
    %p236 = scmp.lt.s32.totalorder %s13, 3
    %p237 = pnand %p235, %p236
    %p238 = pneg %p237
    // Predicated region
    $region45: #{transformer_forward.7} parent=5 // pred_check
      _
    $region46: #{transformer_forward.7} parent=5 // pred_check_branch
      %240 = sbr.rel (%p237) target = $region48
    $region47: #{transformer_forward.7} parent=5 // pred_region
      %s241 = ssub.s32 %s13, 1
      %p242 = scmp.lt.s32.totalorder %s18, 1
      %s243 = scalar_select %p242, %s18, 1
      %s244 = smul.addr %s243, 4
      %s245 = scalar_lea.vmem %s0, %s244
      %p246 = pneg %p39
      %p247 = pneg %p36
      %p248 = pneg %p60
      %p249 = pneg %p57
      %p250 = pneg %p81
      %p251 = pneg %p78
      %p252 = pneg %p102
      %p253 = pneg %p99
      %p254 = pneg %p123
      %p255 = pneg %p120
      %p256 = pneg %p144
      %p257 = pneg %p141
      %p258 = pneg %p165
      %p259 = pneg %p162
      %p260 = pneg %p191
      %p261 = pneg %p188
      %p262 = scmp.lt.s32.totalorder %s18, 1
      %s263 = scalar_select %p262, %s18, 1
      %s264 = smul.addr %s263, 4
      %s265 = scalar_lea.vmem %s7, %s264
      %p266 = scmp.lt.s32.totalorder %s18, 1
      %s267 = scalar_select %p266, %s18, 1
      %s268 = smul.addr %s267, 4
      %s269 = scalar_lea.vmem %s0, %s268
      %p270 = scmp.lt.s32.totalorder %s18, 1
      %s271 = scalar_select %p270, %s18, 1
      %s272 = smul.addr %s271, 4
      %s273 = scalar_lea.vmem %s7, %s272
      %v275 = vld [vmem:[%s269] sm:$0xf]
      %v276 = vld [vmem:[%s1] sm:$0xf]
      %v277 = vld [vmem:[%s1 + $0x4] sm:$0xf]
      %v278 = vld [vmem:[%s1 + $0x8] sm:$0xf]
      %v279 = vld [vmem:[%s1 + $0xc] sm:$0xf]
      %v280 = vld [vmem:[%s2] sm:$0x1]
      %v282 = vperm.slane %v280, 0
      %v288 = vunpack.c.l.b16 %v276
      %v289 = vunpack.c.l.b16 %v277
      %v290 = vunpack.c.l.b16 %v278
      %v291 = vunpack.c.l.b16 %v279
      %v292 = vpack.c.b16 %v289, %v288
      %v293 = vpack.c.b16 %v291, %v290
      %vm296 = vcmask 261120
      %v298 = vsel %vm296, %v275, 0
      %300 = vmatpush.bf16.msra.mxu0 0
      %301 = vmatpush.bf16.msra.mxu0 0
      %302 = vmatpush.bf16.msra.mxu0 0
      %303 = vmatpush.bf16.msra.mxu0 0
      %304 = vmatpush.bf16.msra.mxu0 0
      %305 = vmatpush.bf16.msra.mxu0 0
      %306 = vmatpush.bf16.msra.mxu0 %v293
      %307 = vmatpush.bf16.msra.mxu0 %v292
      %308 = vmatmul.bf16.gmra.mxu0 %v298
      %v309 = vpop.f32.mrf.mxu0
      %v310 = vadd.f32 %v282, %v309
      %v311 = vpop.f32.mrf.mxu0
      %312 = vdwg.mxu0
      %v313 = vld [vmem:[%s3] sm:$0xf]
      %v314 = vld [vmem:[%s3 + $0x4] sm:$0xf]
      %v315 = vld [vmem:[%s3 + $0x8] sm:$0xf]
      %v316 = vld [vmem:[%s3 + $0xc] sm:$0xf]
      %v317 = vunpack.c.l.bf16 %v275
      %v318 = vld [vmem:[%s4] sm:$0x1]
      %v320 = vperm.slane %v318, 0
      %v322 = vadd.f32 %v317, %v320
      %v323 = vpack.c.bf16 %v310, %v310
      %325 = vrot.lane.b32.xlu0 %v323, 96
      %v326 = vpop.permute.xlu0 %325
      %vm327 = vcmask 64512
      %v329 = vsel %vm327, %v323, 0
      %v332 = vsel %vm327, %v326, 0
      %334 = vmatpush.bf16.xpose.msra.mxu0 0
      %335 = vmatpush.bf16.xpose.msra.mxu0 0
      %336 = vmatpush.bf16.xpose.msra.mxu0 0
      %337 = vmatpush.bf16.xpose.msra.mxu0 0
      %338 = vmatpush.bf16.xpose.msra.mxu0 0
      %339 = vmatpush.bf16.xpose.msra.mxu0 0
      %340 = vmatpush.bf16.xpose.msra.mxu0 0
      %341 = vmatpush.bf16.xpose.msra.mxu0 %v332
      %342 = vmatmul.bf16.gmra.mxu0 %v329
      %v343 = vpop.f32.mrf.mxu0
      %v344 = vadd.f32 0.0, %v343
      %v345 = vpop.f32.mrf.mxu0
      %346 = vdwg.mxu0
      %v347 = vmul.f32 %v344, 0.35355338
      %v348 = vsel %vm327, %v347, -inf
      %349 = vmax.xlane.f32.xlu0 %v348
      %v350 = vpop.xlane.xlu0 %349
      %v351 = vsub.f32 %v347, %v350
      %v352 = vmul.f32 %v351, 1.442695
      %v353 = vpow.pop %v352
      %v354 = vsel %vm327, %v353, 0.0
      %355 = vadd.xlane.f32.xlu0 %v354
      %v356 = vpop.xlane.xlu0 %355
      %v357 = vrcp.pop %v356
      %v358 = vmul.f32 %v353, %v357
      %v359 = vpack.c.bf16 %v358, %v358
      %360 = vrot.lane.b32.xlu0 %v323, 64
      %v361 = vpop.permute.xlu0 %360
      %v363 = vsel %vm327, %v359, 0
      %vm365 = vcmask 1043456
      %v367 = vsel %vm365, %v361, 0
      %369 = vmatpush.bf16.msra.mxu0 0
      %370 = vmatpush.bf16.msra.mxu0 0
      %371 = vmatpush.bf16.msra.mxu0 0
      %372 = vmatpush.bf16.msra.mxu0 0
      %373 = vmatpush.bf16.msra.mxu0 0
      %374 = vmatpush.bf16.msra.mxu0 0
      %375 = vmatpush.bf16.msra.mxu0 0
      %376 = vmatpush.bf16.msra.mxu0 %v367
      %377 = vmatmul.bf16.gmra.mxu0 %v363
      %v378 = vpop.f32.mrf.mxu0
      %v379 = vadd.f32 0.0, %v378
      %v380 = vpop.f32.mrf.mxu0
      %381 = vdwg.mxu0
      %v382 = vpack.c.bf16 %v379, %v379
      %v384 = vsel %vm327, %v382, 0
      %v387 = vsel %vm365, %v313, 0
      %389 = vmatpush.bf16.msra.mxu0 0
      %390 = vmatpush.bf16.msra.mxu0 0
      %391 = vmatpush.bf16.msra.mxu0 0
      %392 = vmatpush.bf16.msra.mxu0 0
      %393 = vmatpush.bf16.msra.mxu0 0
      %394 = vmatpush.bf16.msra.mxu0 0
      %395 = vmatpush.bf16.msra.mxu0 0
      %396 = vmatpush.bf16.msra.mxu0 %v387
      %397 = vmatmul.bf16.gmra.mxu0 %v384
      %v398 = vpop.f32.mrf.mxu0
      %v399 = vadd.f32 0.0, %v398
      %v400 = vpop.f32.mrf.mxu0
      %401 = vdwg.mxu0
      %v402 = vadd.f32 %v322, %v399
      %403 = vrot.lane.b32.xlu0 %v323, 120
      %v404 = vpop.permute.xlu0 %403
      %405 = vrot.lane.b32.xlu0 %v323, 88
      %v406 = vpop.permute.xlu0 %405
      %v408 = vsel %vm327, %v404, 0
      %v411 = vsel %vm327, %v406, 0
      %413 = vmatpush.bf16.xpose.msra.mxu0 0
      %414 = vmatpush.bf16.xpose.msra.mxu0 0
      %415 = vmatpush.bf16.xpose.msra.mxu0 0
      %416 = vmatpush.bf16.xpose.msra.mxu0 0
      %417 = vmatpush.bf16.xpose.msra.mxu0 0
      %418 = vmatpush.bf16.xpose.msra.mxu0 0
      %419 = vmatpush.bf16.xpose.msra.mxu0 0
      %420 = vmatpush.bf16.xpose.msra.mxu0 %v411
      %421 = vmatmul.bf16.gmra.mxu0 %v408
      %v422 = vpop.f32.mrf.mxu0
      %v423 = vadd.f32 0.0, %v422
      %v424 = vpop.f32.mrf.mxu0
      %425 = vdwg.mxu0
      %v426 = vmul.f32 %v423, 0.35355338
      %v427 = vsel %vm327, %v426, -inf
      %428 = vmax.xlane.f32.xlu0 %v427
      %v429 = vpop.xlane.xlu0 %428
      %v430 = vsub.f32 %v426, %v429
      %v431 = vmul.f32 %v430, 1.442695
      %v432 = vpow.pop %v431
      %v433 = vsel %vm327, %v432, 0.0
      %434 = vadd.xlane.f32.xlu0 %v433
      %v435 = vpop.xlane.xlu0 %434
      %v436 = vrcp.pop %v435
      %v437 = vmul.f32 %v432, %v436
      %v438 = vpack.c.bf16 %v437, %v437
      %439 = vrot.lane.b32.xlu0 %v323, 56
      %v440 = vpop.permute.xlu0 %439
      %v442 = vsel %vm327, %v438, 0
      %v445 = vsel %vm365, %v440, 0
      %447 = vmatpush.bf16.msra.mxu0 0
      %448 = vmatpush.bf16.msra.mxu0 0
      %449 = vmatpush.bf16.msra.mxu0 0
      %450 = vmatpush.bf16.msra.mxu0 0
      %451 = vmatpush.bf16.msra.mxu0 0
      %452 = vmatpush.bf16.msra.mxu0 0
      %453 = vmatpush.bf16.msra.mxu0 0
      %454 = vmatpush.bf16.msra.mxu0 %v445
      %455 = vmatmul.bf16.gmra.mxu0 %v442
      %v456 = vpop.f32.mrf.mxu0
      %v457 = vadd.f32 0.0, %v456
      %v458 = vpop.f32.mrf.mxu0
      %459 = vdwg.mxu0
      %v460 = vpack.c.bf16 %v457, %v457
      %v462 = vsel %vm327, %v460, 0
      %v465 = vsel %vm365, %v314, 0
      %467 = vmatpush.bf16.msra.mxu0 0
      %468 = vmatpush.bf16.msra.mxu0 0
      %469 = vmatpush.bf16.msra.mxu0 0
      %470 = vmatpush.bf16.msra.mxu0 0
      %471 = vmatpush.bf16.msra.mxu0 0
      %472 = vmatpush.bf16.msra.mxu0 0
      %473 = vmatpush.bf16.msra.mxu0 0
      %474 = vmatpush.bf16.msra.mxu0 %v465
      %475 = vmatmul.bf16.gmra.mxu0 %v462
      %v476 = vpop.f32.mrf.mxu0
      %v477 = vadd.f32 0.0, %v476
      %v478 = vpop.f32.mrf.mxu0
      %479 = vdwg.mxu0
      %v480 = vadd.f32 %v402, %v477
      %481 = vrot.lane.b32.xlu0 %v323, 112
      %v482 = vpop.permute.xlu0 %481
      %483 = vrot.lane.b32.xlu0 %v323, 80
      %v484 = vpop.permute.xlu0 %483
      %v486 = vsel %vm327, %v482, 0
      %v489 = vsel %vm327, %v484, 0
      %491 = vmatpush.bf16.xpose.msra.mxu0 0
      %492 = vmatpush.bf16.xpose.msra.mxu0 0
      %493 = vmatpush.bf16.xpose.msra.mxu0 0
      %494 = vmatpush.bf16.xpose.msra.mxu0 0
      %495 = vmatpush.bf16.xpose.msra.mxu0 0
      %496 = vmatpush.bf16.xpose.msra.mxu0 0
      %497 = vmatpush.bf16.xpose.msra.mxu0 0
      %498 = vmatpush.bf16.xpose.msra.mxu0 %v489
      %499 = vmatmul.bf16.gmra.mxu0 %v486
      %v500 = vpop.f32.mrf.mxu0
      %v501 = vadd.f32 0.0, %v500
      %v502 = vpop.f32.mrf.mxu0
      %503 = vdwg.mxu0
      %v504 = vmul.f32 %v501, 0.35355338
      %v505 = vsel %vm327, %v504, -inf
      %506 = vmax.xlane.f32.xlu0 %v505
      %v507 = vpop.xlane.xlu0 %506
      %v508 = vsub.f32 %v504, %v507
      %v509 = vmul.f32 %v508, 1.442695
      %v510 = vpow.pop %v509
      %v511 = vsel %vm327, %v510, 0.0
      %512 = vadd.xlane.f32.xlu0 %v511
      %v513 = vpop.xlane.xlu0 %512
      %v514 = vrcp.pop %v513
      %v515 = vmul.f32 %v510, %v514
      %v516 = vpack.c.bf16 %v515, %v515
      %517 = vrot.lane.b32.xlu0 %v323, 48
      %v518 = vpop.permute.xlu0 %517
      %v520 = vsel %vm327, %v516, 0
      %v523 = vsel %vm365, %v518, 0
      %525 = vmatpush.bf16.msra.mxu0 0
      %526 = vmatpush.bf16.msra.mxu0 0
      %527 = vmatpush.bf16.msra.mxu0 0
      %528 = vmatpush.bf16.msra.mxu0 0
      %529 = vmatpush.bf16.msra.mxu0 0
      %530 = vmatpush.bf16.msra.mxu0 0
      %531 = vmatpush.bf16.msra.mxu0 0
      %532 = vmatpush.bf16.msra.mxu0 %v523
      %533 = vmatmul.bf16.gmra.mxu0 %v520
      %v534 = vpop.f32.mrf.mxu0
      %v535 = vadd.f32 0.0, %v534
      %v536 = vpop.f32.mrf.mxu0
      %537 = vdwg.mxu0
      %v538 = vpack.c.bf16 %v535, %v535
      %v540 = vsel %vm327, %v538, 0
      %v543 = vsel %vm365, %v315, 0
      %545 = vmatpush.bf16.msra.mxu0 0
      %546 = vmatpush.bf16.msra.mxu0 0
      %547 = vmatpush.bf16.msra.mxu0 0
      %548 = vmatpush.bf16.msra.mxu0 0
      %549 = vmatpush.bf16.msra.mxu0 0
      %550 = vmatpush.bf16.msra.mxu0 0
      %551 = vmatpush.bf16.msra.mxu0 0
      %552 = vmatpush.bf16.msra.mxu0 %v543
      %553 = vmatmul.bf16.gmra.mxu0 %v540
      %v554 = vpop.f32.mrf.mxu0
      %v555 = vadd.f32 0.0, %v554
      %v556 = vpop.f32.mrf.mxu0
      %557 = vdwg.mxu0
      %v558 = vadd.f32 %v480, %v555
      %559 = vrot.lane.b32.xlu0 %v323, 104
      %v560 = vpop.permute.xlu0 %559
      %561 = vrot.lane.b32.xlu0 %v323, 72
      %v562 = vpop.permute.xlu0 %561
      %v564 = vsel %vm327, %v560, 0
      %v567 = vsel %vm327, %v562, 0
      %569 = vmatpush.bf16.xpose.msra.mxu0 0
      %570 = vmatpush.bf16.xpose.msra.mxu0 0
      %571 = vmatpush.bf16.xpose.msra.mxu0 0
      %572 = vmatpush.bf16.xpose.msra.mxu0 0
      %573 = vmatpush.bf16.xpose.msra.mxu0 0
      %574 = vmatpush.bf16.xpose.msra.mxu0 0
      %575 = vmatpush.bf16.xpose.msra.mxu0 0
      %576 = vmatpush.bf16.xpose.msra.mxu0 %v567
      %577 = vmatmul.bf16.gmra.mxu0 %v564
      %v578 = vpop.f32.mrf.mxu0
      %v579 = vadd.f32 0.0, %v578
      %v580 = vpop.f32.mrf.mxu0
      %581 = vdwg.mxu0
      %v582 = vmul.f32 %v579, 0.35355338
      %v583 = vsel %vm327, %v582, -inf
      %584 = vmax.xlane.f32.xlu0 %v583
      %v585 = vpop.xlane.xlu0 %584
      %v586 = vsub.f32 %v582, %v585
      %v587 = vmul.f32 %v586, 1.442695
      %v588 = vpow.pop %v587
      %v589 = vsel %vm327, %v588, 0.0
      %590 = vadd.xlane.f32.xlu0 %v589
      %v591 = vpop.xlane.xlu0 %590
      %v592 = vrcp.pop %v591
      %v593 = vmul.f32 %v588, %v592
      %v594 = vpack.c.bf16 %v593, %v593
      %595 = vrot.lane.b32.xlu0 %v323, 40
      %v596 = vpop.permute.xlu0 %595
      %v598 = vsel %vm327, %v594, 0
      %v601 = vsel %vm365, %v596, 0
      %603 = vmatpush.bf16.msra.mxu0 0
      %604 = vmatpush.bf16.msra.mxu0 0
      %605 = vmatpush.bf16.msra.mxu0 0
      %606 = vmatpush.bf16.msra.mxu0 0
      %607 = vmatpush.bf16.msra.mxu0 0
      %608 = vmatpush.bf16.msra.mxu0 0
      %609 = vmatpush.bf16.msra.mxu0 0
      %610 = vmatpush.bf16.msra.mxu0 %v601
      %611 = vmatmul.bf16.gmra.mxu0 %v598
      %v612 = vpop.f32.mrf.mxu0
      %v613 = vadd.f32 0.0, %v612
      %v614 = vpop.f32.mrf.mxu0
      %615 = vdwg.mxu0
      %v616 = vpack.c.bf16 %v613, %v613
      %v618 = vsel %vm327, %v616, 0
      %v621 = vsel %vm365, %v316, 0
      %623 = vmatpush.bf16.msra.mxu0 0
      %624 = vmatpush.bf16.msra.mxu0 0
      %625 = vmatpush.bf16.msra.mxu0 0
      %626 = vmatpush.bf16.msra.mxu0 0
      %627 = vmatpush.bf16.msra.mxu0 0
      %628 = vmatpush.bf16.msra.mxu0 0
      %629 = vmatpush.bf16.msra.mxu0 0
      %630 = vmatpush.bf16.msra.mxu0 %v621
      %631 = vmatmul.bf16.gmra.mxu0 %v618
      %v632 = vpop.f32.mrf.mxu0
      %v633 = vadd.f32 0.0, %v632
      %v634 = vpop.f32.mrf.mxu0
      %635 = vdwg.mxu0
      %v636 = vadd.f32 %v558, %v633
      %v637 = vld [vmem:[%s5] sm:$0x1]
      %v638 = vld [vmem:[%s6] sm:$0x1]
      %v639 = vsel %vm296, %v636, 0.0
      %640 = vadd.xlane.f32.xlu0 %v639
      %v641 = vpop.xlane.xlu0 %640
      %v642 = vrcp.pop 32.0
      %v643 = vmul.f32 32.0, %v642
      %v644 = vsub.f32 1.0, %v643
      %v645 = vmul.f32 %v642, %v644
      %v646 = vadd.f32 %v642, %v645
      %vm647 = vweird.f32 %v642
      %v648 = vsel %vm647, %v642, %v646
      %v649 = vmul.f32 %v641, %v648
      %v650 = vsub.f32 %v636, %v649
      %v651 = vmul.f32 %v650, %v650
      %v652 = vsel %vm296, %v651, 0.0
      %653 = vadd.xlane.f32.xlu0 %v652
      %v654 = vpop.xlane.xlu0 %653
      %v655 = vmul.f32 %v654, %v648
      %v656 = vadd.f32 %v655, 1e-05
      %v657 = vrsqrt.pop %v656
      %v658 = vmul.f32 %v657, %v656
      %v659 = vmul.f32 %v658, %v657
      %v660 = vmul.f32 0.5, %v659
      %v661 = vsub.f32 1.5, %v660
      %v662 = vmul.f32 %v657, %v661
      %vm663 = vweird.f32 %v656
      %vm664 = vweird.f32 %v657
      %vm665 = vmor %vm663, %vm664
      %v666 = vsel %vm665, %v657, %v662
      %v667 = vmul.f32 %v650, %v666
      %v669 = vperm.slane %v637, 0
      %v671 = vmul.f32 %v667, %v669
      %v673 = vperm.slane %v638, 0
      %v675 = vadd.f32 %v671, %v673
      %v676 = vpack.c.bf16 %v675, %v675
      %vm677 = vcmask 257024
      %678 = vst.msk [vmem:[%s273] sm:$0xf] %vm677, %v676
      %p679 = scmp.lt.s32.totalorder %s18, 1
      %s680 = scalar_select %p679, %s18, 1
      %s681 = smul.addr %s680, 4
      %s682 = scalar_lea.vmem %s7, %s681
      // Predicated region
      $region49: #{transformer_forward.7} parent=47 // pred_check
        %p683 = pneg %p188
      $region50: #{transformer_forward.7} parent=47 // pred_check_branch
        %685 = sbr.rel (%p683) target = $region52
      $region51: #{transformer_forward.7} parent=47 // pred_region
        _
      $region52: #{transformer_forward.7} parent=47 // pred_fallthru
        _
    $region48: #{transformer_forward.7} parent=5 // pred_fallthru
      _
    %p686 = scmp.le.s32.totalorder 2, %s13
    // Predicated region
    $region53: #{transformer_forward.7} parent=5 // pred_check
      %p687 = pneg %p686
    $region54: #{transformer_forward.7} parent=5 // pred_check_branch
      %689 = sbr.rel (%p687) target = $region56
    $region55: #{transformer_forward.7} parent=5 // pred_region
      %s690 = ssub.s32 %s13, 2
      // Predicated region
      $region57: #{transformer_forward.7} parent=55 // pred_check
        %p691 = pneg %p194
      $region58: #{transformer_forward.7} parent=55 // pred_check_branch
        %693 = sbr.rel (%p691) target = $region60
      $region59: #{transformer_forward.7} parent=55 // pred_region
        %p694 = scmp.lt.s32.totalorder %s19, 1
        %s695 = scalar_select %p694, %s19, 1
        %s696 = smul.addr %s695, 4
        %s697 = scalar_lea.vmem %s7, %s696
      $region60: #{transformer_forward.7} parent=55 // pred_fallthru
        _
    $region56: #{transformer_forward.7} parent=5 // pred_fallthru
      _
  $region6: #{transformer_forward.7} parent=0 // loop_footer
    %s17 = sadd.s32 1, %s13
  $region7: #{transformer_forward.7} parent=0 // loop_footer_branch
    %12 = sbr.rel target = $region3
  $region8: #{transformer_forward.7} parent=0 // loop_exit
    _

// kernel: transformer_forward.11
$region0: #{transformer_forward.11}
  #allocation0 [shape = 'u32[]', space=smem, size = 0x4, offset = 0x4, fixed_abs, tag = 'smem constant byte address 0x4 - core index']
  #allocation1 [shape = 'u32[72,128]{1,0:T(1,128)}', space=vmem, size = 0x9000, scoped, tag = 'internal scratch']
  %s0 = inlined_call_operand.vmem [shape: bf16[16,32], index: 0, kind: input, shape index: {}]
  %s1 = inlined_call_operand.vmem [shape: bf16[32,128], index: 1, kind: input, shape index: {}]
  %s2 = inlined_call_operand.vmem [shape: f32[1,128], index: 2, kind: input, shape index: {}]
  %s3 = inlined_call_operand.vmem [shape: f32[16,128], index: 3, kind: output, shape index: {}]
  %s4 = sld [smem:[#allocation0]]
  $region45: #{transformer_forward.11} parent=0
    _
  %s6 = ssub.s32 1, %s4
  %s7 = scalar_select 0, %s6, %s4
  loop: start=0, step=1, limit=4
  $region2: #{transformer_forward.11} parent=0 // loop_pre_header
    _
  $region3: #{transformer_forward.11} parent=0 // loop_header
    %s9 = sphi 0, %s13
    %p10 = scmp.ge.s32.totalorder %s9, 4
    %s19 = sphi 0, %s21
    %s22 = sphi 0, %s19
    %s23 = sphi 0, %s22
    %s39 = sphi 0, %s23
    %s43 = sphi 0, %s43
    %s45 = sphi 0, %s43
    %s46 = sphi 0, %s45
    %s60 = sphi 0, %s46
    %s64 = sphi 0, %s64
    %s66 = sphi 0, %s64
    %s67 = sphi 0, %s66
    %s81 = sphi 0, %s67
    %s87 = sphi 0, %s89
    %s90 = sphi 0, %s87
    %s91 = sphi 0, %s90
    %s107 = sphi 0, %s91
  $region4: #{transformer_forward.11} parent=0 // loop_header_branch
    %12 = sbr.rel (%p10) target = $region8
  $region5: #{transformer_forward.11} parent=0 // loop_body
    %s14 = ssub.s32 %s9, 1
    %s15 = ssub.s32 %s9, 2
    %s16 = sadd.s32 %s9, 1
    %s17 = ssub.s32 %s9, %s16
    %p18 = scmp.eq.s32.totalorder %s17, 0
    %s20 = sadd.s32 %s19, 1
    %s21 = scalar_select %p18, %s19, %s20
    %p24 = pneg %p18
    %p25 = scmp.eq.s32.totalorder %s9, 1
    %p26 = por %p24, %p25
    %p27 = scmp.ne.s32.totalorder %s19, %s22
    %p28 = scmp.eq.s32.totalorder %s9, 0
    %p29 = por %p27, %p28
    %p30 = scmp.ne.s32.totalorder %s19, %s22
    %p31 = scmp.eq.s32.totalorder %s14, 1
    %p32 = por %p30, %p31
    %p33 = scmp.ne.s32.totalorder %s22, %s23
    %p34 = scmp.eq.s32.totalorder %s14, 0
    %p35 = por %p33, %p34
    %p36 = scmp.ne.s32.totalorder %s22, %s23
    %p37 = scmp.eq.s32.totalorder %s15, 1
    %p38 = por %p36, %p37
    %p40 = scmp.ne.s32.totalorder %s23, %s39
    %p41 = scmp.eq.s32.totalorder %s15, 0
    %p42 = por %p40, %p41
    %s44 = sadd.s32 %s43, 1
    %p47 = scmp.eq.s32.totalorder %s9, 1
    %p48 = scmp.ne.s32.totalorder %s43, %s45
    %p49 = scmp.eq.s32.totalorder %s9, 0
    %p50 = por %p48, %p49
    %p51 = scmp.ne.s32.totalorder %s43, %s45
    %p52 = scmp.eq.s32.totalorder %s14, 1
    %p53 = por %p51, %p52
    %p54 = scmp.ne.s32.totalorder %s45, %s46
    %p55 = scmp.eq.s32.totalorder %s14, 0
    %p56 = por %p54, %p55
    %p57 = scmp.ne.s32.totalorder %s45, %s46
    %p58 = scmp.eq.s32.totalorder %s15, 1
    %p59 = por %p57, %p58
    %p61 = scmp.ne.s32.totalorder %s46, %s60
    %p62 = scmp.eq.s32.totalorder %s15, 0
    %p63 = por %p61, %p62
    %s65 = sadd.s32 %s64, 1
    %p68 = scmp.eq.s32.totalorder %s9, 1
    %p69 = scmp.ne.s32.totalorder %s64, %s66
    %p70 = scmp.eq.s32.totalorder %s9, 0
    %p71 = por %p69, %p70
    %p72 = scmp.ne.s32.totalorder %s64, %s66
    %p73 = scmp.eq.s32.totalorder %s14, 1
    %p74 = por %p72, %p73
    %p75 = scmp.ne.s32.totalorder %s66, %s67
    %p76 = scmp.eq.s32.totalorder %s14, 0
    %p77 = por %p75, %p76
    %p78 = scmp.ne.s32.totalorder %s66, %s67
    %p79 = scmp.eq.s32.totalorder %s15, 1
    %p80 = por %p78, %p79
    %p82 = scmp.ne.s32.totalorder %s67, %s81
    %p83 = scmp.eq.s32.totalorder %s15, 0
    %p84 = por %p82, %p83
    %s85 = ssub.s32 %s9, %s16
    %p86 = scmp.eq.s32.totalorder %s85, 0
    %s88 = sadd.s32 %s87, 1
    %s89 = scalar_select %p86, %s87, %s88
    %p92 = pneg %p86
    %p93 = scmp.eq.s32.totalorder %s9, 1
    %p94 = por %p92, %p93
    %p95 = scmp.ne.s32.totalorder %s87, %s90
    %p96 = scmp.eq.s32.totalorder %s9, 0
    %p97 = por %p95, %p96
    %p98 = scmp.ne.s32.totalorder %s87, %s90
    %p99 = scmp.eq.s32.totalorder %s14, 1
    %p100 = por %p98, %p99
    %p101 = scmp.ne.s32.totalorder %s90, %s91
    %p102 = scmp.eq.s32.totalorder %s14, 0
    %p103 = por %p101, %p102
    %p104 = scmp.ne.s32.totalorder %s90, %s91
    %p105 = scmp.eq.s32.totalorder %s15, 1
    %p106 = por %p104, %p105
    %p108 = scmp.ne.s32.totalorder %s91, %s107
    %p109 = scmp.eq.s32.totalorder %s15, 0
    %p110 = por %p108, %p109
    %p111 = scmp.le.s32.totalorder 1, %s9
    %p112 = scmp.lt.s32.totalorder %s9, 3
    %p113 = pnand %p111, %p112
    %p114 = pneg %p113
    // Predicated region
    $region9: #{transformer_forward.11} parent=5 // pred_check
      _
    $region10: #{transformer_forward.11} parent=5 // pred_check_branch
      %116 = sbr.rel (%p113) target = $region12
    $region11: #{transformer_forward.11} parent=5 // pred_region
      %s117 = ssub.s32 %s9, 1
      // Predicated region
      $region13: #{transformer_forward.11} parent=11 // pred_check
        %p118 = pneg %p56
      $region14: #{transformer_forward.11} parent=11 // pred_check_branch
        %120 = sbr.rel (%p118) target = $region16
      $region15: #{transformer_forward.11} parent=11 // pred_region
        _
      $region16: #{transformer_forward.11} parent=11 // pred_fallthru
        _
      // Predicated region
      $region17: #{transformer_forward.11} parent=11 // pred_check
        %p121 = pneg %p77
      $region18: #{transformer_forward.11} parent=11 // pred_check_branch
        %123 = sbr.rel (%p121) target = $region20
      $region19: #{transformer_forward.11} parent=11 // pred_region
        _
      $region20: #{transformer_forward.11} parent=11 // pred_fallthru
        _
    $region12: #{transformer_forward.11} parent=5 // pred_fallthru
      _
    %p124 = scmp.lt.s32.totalorder %s9, 2
    // Predicated region
    $region21: #{transformer_forward.11} parent=5 // pred_check
      %p125 = pneg %p124
    $region22: #{transformer_forward.11} parent=5 // pred_check_branch
      %127 = sbr.rel (%p125) target = $region24
    $region23: #{transformer_forward.11} parent=5 // pred_region
      // Predicated region
      $region25: #{transformer_forward.11} parent=23 // pred_check
        %p128 = pneg %p29
      $region26: #{transformer_forward.11} parent=23 // pred_check_branch
        %130 = sbr.rel (%p128) target = $region28
      $region27: #{transformer_forward.11} parent=23 // pred_region
        %p131 = scmp.lt.s32.totalorder %s9, 1
        %s132 = scalar_select %p131, %s9, 1
        %s133 = smul.addr %s132, 4
        %s134 = scalar_lea.vmem %s0, %s133
      $region28: #{transformer_forward.11} parent=23 // pred_fallthru
        _
    $region24: #{transformer_forward.11} parent=5 // pred_fallthru
      _
    %p135 = scmp.le.s32.totalorder 1, %s9
    %p136 = scmp.lt.s32.totalorder %s9, 3
    %p137 = pnand %p135, %p136
    %p138 = pneg %p137
    // Predicated region
    $region29: #{transformer_forward.11} parent=5 // pred_check
      _
    $region30: #{transformer_forward.11} parent=5 // pred_check_branch
      %140 = sbr.rel (%p137) target = $region32
    $region31: #{transformer_forward.11} parent=5 // pred_region
      %s141 = ssub.s32 %s9, 1
      %p142 = scmp.lt.s32.totalorder %s14, 1
      %s143 = scalar_select %p142, %s14, 1
      %s144 = smul.addr %s143, 4
      %s145 = scalar_lea.vmem %s0, %s144
      %p146 = pneg %p35
      %p147 = pneg %p32
      %p148 = pneg %p56
      %p149 = pneg %p53
      %p150 = pneg %p77
      %p151 = pneg %p74
      %p152 = pneg %p103
      %p153 = pneg %p100
      %p154 = scmp.lt.s32.totalorder %s14, 1
      %s155 = scalar_select %p154, %s14, 1
      %s156 = smul.addr %s155, 8
      %s157 = scalar_lea.vmem %s3, %s156
      %p158 = scmp.lt.s32.totalorder %s14, 1
      %s159 = scalar_select %p158, %s14, 1
      %s160 = smul.addr %s159, 4
      %s161 = scalar_lea.vmem %s0, %s160
      %p162 = scmp.lt.s32.totalorder %s14, 1
      %s163 = scalar_select %p162, %s14, 1
      %s164 = smul.addr %s163, 8
      %s165 = scalar_lea.vmem %s3, %s164
      %v167 = vld [vmem:[%s161] sm:$0xf]
      %v168 = vld [vmem:[%s1] sm:$0xf]
      %v169 = vld [vmem:[%s1 + $0x4] sm:$0xf]
      %v170 = vld [vmem:[%s1 + $0x8] sm:$0xf]
      %v171 = vld [vmem:[%s1 + $0xc] sm:$0xf]
      %v172 = vld [vmem:[%s2] sm:$0x1]
      %v174 = vperm.slane %v172, 0
      %v180 = vunpack.c.l.b16 %v168
      %v181 = vunpack.c.l.b16 %v169
      %v182 = vunpack.c.l.b16 %v170
      %v183 = vunpack.c.l.b16 %v171
      %v184 = vpack.c.b16 %v181, %v180
      %v185 = vpack.c.b16 %v183, %v182
      %vm188 = vcmask 261120
      %v190 = vsel %vm188, %v167, 0
      %192 = vmatpush.bf16.msra.mxu0 0
      %193 = vmatpush.bf16.msra.mxu0 0
      %194 = vmatpush.bf16.msra.mxu0 0
      %195 = vmatpush.bf16.msra.mxu0 0
      %196 = vmatpush.bf16.msra.mxu0 0
      %197 = vmatpush.bf16.msra.mxu0 0
      %198 = vmatpush.bf16.msra.mxu0 %v185
      %199 = vmatpush.bf16.msra.mxu0 %v184
      %200 = vmatmul.bf16.gmra.mxu0 %v190
      %v201 = vpop.f32.mrf.mxu0
      %v202 = vadd.f32 %v174, %v201
      %v203 = vpop.f32.mrf.mxu0
      %204 = vdwg.mxu0
      %205 = vst [vmem:[%s165] sm:$0xff] %v202
      %p206 = scmp.lt.s32.totalorder %s14, 1
      %s207 = scalar_select %p206, %s14, 1
      %s208 = smul.addr %s207, 8
      %s209 = scalar_lea.vmem %s3, %s208
      // Predicated region
      $region33: #{transformer_forward.11} parent=31 // pred_check
        %p210 = pneg %p100
      $region34: #{transformer_forward.11} parent=31 // pred_check_branch
        %212 = sbr.rel (%p210) target = $region36
      $region35: #{transformer_forward.11} parent=31 // pred_region
        _
      $region36: #{transformer_forward.11} parent=31 // pred_fallthru
        _
    $region32: #{transformer_forward.11} parent=5 // pred_fallthru
      _
    %p213 = scmp.le.s32.totalorder 2, %s9
    // Predicated region
    $region37: #{transformer_forward.11} parent=5 // pred_check
      %p214 = pneg %p213
    $region38: #{transformer_forward.11} parent=5 // pred_check_branch
      %216 = sbr.rel (%p214) target = $region40
    $region39: #{transformer_forward.11} parent=5 // pred_region
      %s217 = ssub.s32 %s9, 2
      // Predicated region
      $region41: #{transformer_forward.11} parent=39 // pred_check
        %p218 = pneg %p106
      $region42: #{transformer_forward.11} parent=39 // pred_check_branch
        %220 = sbr.rel (%p218) target = $region44
      $region43: #{transformer_forward.11} parent=39 // pred_region
        %p221 = scmp.lt.s32.totalorder %s15, 1
        %s222 = scalar_select %p221, %s15, 1
        %s223 = smul.addr %s222, 8
        %s224 = scalar_lea.vmem %s3, %s223
      $region44: #{transformer_forward.11} parent=39 // pred_fallthru
        _
    $region40: #{transformer_forward.11} parent=5 // pred_fallthru
      _
  $region6: #{transformer_forward.11} parent=0 // loop_footer
    %s13 = sadd.s32 1, %s9
  $region7: #{transformer_forward.11} parent=0 // loop_footer_branch
    %8 = sbr.rel target = $region3
  $region8: #{transformer_forward.11} parent=0 // loop_exit
    _

// kernel: transformer_forward.8
$region0: #{transformer_forward.8}
  #allocation0 [shape = 'u32[]', space=smem, size = 0x4, offset = 0x4, fixed_abs, tag = 'smem constant byte address 0x4 - core index']
  #allocation1 [shape = 'u32[72,128]{1,0:T(1,128)}', space=vmem, size = 0x9000, scoped, tag = 'internal scratch']
  %s0 = inlined_call_operand.vmem [shape: bf16[16,32], index: 0, kind: input, shape index: {}]
  %s1 = inlined_call_operand.vmem [shape: bf16[32,64], index: 1, kind: input, shape index: {}]
  %s2 = inlined_call_operand.vmem [shape: f32[1,64], index: 2, kind: input, shape index: {}]
  %s3 = inlined_call_operand.vmem [shape: bf16[64,32], index: 3, kind: input, shape index: {}]
  %s4 = inlined_call_operand.vmem [shape: f32[1,32], index: 4, kind: input, shape index: {}]
  %s5 = inlined_call_operand.vmem [shape: f32[1,32], index: 5, kind: input, shape index: {}]
  %s6 = inlined_call_operand.vmem [shape: f32[1,32], index: 6, kind: input, shape index: {}]
  %s7 = inlined_call_operand.vmem [shape: bf16[16,32], index: 7, kind: output, shape index: {}]
  %s8 = sld [smem:[#allocation0]]
  $region61: #{transformer_forward.8} parent=0
    _
  %s10 = ssub.s32 1, %s8
  %s11 = scalar_select 0, %s10, %s8
  loop: start=0, step=1, limit=4
  $region2: #{transformer_forward.8} parent=0 // loop_pre_header
    _
  $region3: #{transformer_forward.8} parent=0 // loop_header
    %s13 = sphi 0, %s17
    %p14 = scmp.ge.s32.totalorder %s13, 4
    %s23 = sphi 0, %s25
    %s26 = sphi 0, %s23
    %s27 = sphi 0, %s26
    %s43 = sphi 0, %s27
    %s47 = sphi 0, %s47
    %s49 = sphi 0, %s47
    %s50 = sphi 0, %s49
    %s64 = sphi 0, %s50
    %s68 = sphi 0, %s68
    %s70 = sphi 0, %s68
    %s71 = sphi 0, %s70
    %s85 = sphi 0, %s71
    %s89 = sphi 0, %s89
    %s91 = sphi 0, %s89
    %s92 = sphi 0, %s91
    %s106 = sphi 0, %s92
    %s110 = sphi 0, %s110
    %s112 = sphi 0, %s110
    %s113 = sphi 0, %s112
    %s127 = sphi 0, %s113
    %s131 = sphi 0, %s131
    %s133 = sphi 0, %s131
    %s134 = sphi 0, %s133
    %s148 = sphi 0, %s134
    %s152 = sphi 0, %s152
    %s154 = sphi 0, %s152
    %s155 = sphi 0, %s154
    %s169 = sphi 0, %s155
    %s175 = sphi 0, %s177
    %s178 = sphi 0, %s175
    %s179 = sphi 0, %s178
    %s195 = sphi 0, %s179
  $region4: #{transformer_forward.8} parent=0 // loop_header_branch
    %16 = sbr.rel (%p14) target = $region8
  $region5: #{transformer_forward.8} parent=0 // loop_body
    %s18 = ssub.s32 %s13, 1
    %s19 = ssub.s32 %s13, 2
    %s20 = sadd.s32 %s13, 1
    %s21 = ssub.s32 %s13, %s20
    %p22 = scmp.eq.s32.totalorder %s21, 0
    %s24 = sadd.s32 %s23, 1
    %s25 = scalar_select %p22, %s23, %s24
    %p28 = pneg %p22
    %p29 = scmp.eq.s32.totalorder %s13, 1
    %p30 = por %p28, %p29
    %p31 = scmp.ne.s32.totalorder %s23, %s26
    %p32 = scmp.eq.s32.totalorder %s13, 0
    %p33 = por %p31, %p32
    %p34 = scmp.ne.s32.totalorder %s23, %s26
    %p35 = scmp.eq.s32.totalorder %s18, 1
    %p36 = por %p34, %p35
    %p37 = scmp.ne.s32.totalorder %s26, %s27
    %p38 = scmp.eq.s32.totalorder %s18, 0
    %p39 = por %p37, %p38
    %p40 = scmp.ne.s32.totalorder %s26, %s27
    %p41 = scmp.eq.s32.totalorder %s19, 1
    %p42 = por %p40, %p41
    %p44 = scmp.ne.s32.totalorder %s27, %s43
    %p45 = scmp.eq.s32.totalorder %s19, 0
    %p46 = por %p44, %p45
    %s48 = sadd.s32 %s47, 1
    %p51 = scmp.eq.s32.totalorder %s13, 1
    %p52 = scmp.ne.s32.totalorder %s47, %s49
    %p53 = scmp.eq.s32.totalorder %s13, 0
    %p54 = por %p52, %p53
    %p55 = scmp.ne.s32.totalorder %s47, %s49
    %p56 = scmp.eq.s32.totalorder %s18, 1
    %p57 = por %p55, %p56
    %p58 = scmp.ne.s32.totalorder %s49, %s50
    %p59 = scmp.eq.s32.totalorder %s18, 0
    %p60 = por %p58, %p59
    %p61 = scmp.ne.s32.totalorder %s49, %s50
    %p62 = scmp.eq.s32.totalorder %s19, 1
    %p63 = por %p61, %p62
    %p65 = scmp.ne.s32.totalorder %s50, %s64
    %p66 = scmp.eq.s32.totalorder %s19, 0
    %p67 = por %p65, %p66
    %s69 = sadd.s32 %s68, 1
    %p72 = scmp.eq.s32.totalorder %s13, 1
    %p73 = scmp.ne.s32.totalorder %s68, %s70
    %p74 = scmp.eq.s32.totalorder %s13, 0
    %p75 = por %p73, %p74
    %p76 = scmp.ne.s32.totalorder %s68, %s70
    %p77 = scmp.eq.s32.totalorder %s18, 1
    %p78 = por %p76, %p77
    %p79 = scmp.ne.s32.totalorder %s70, %s71
    %p80 = scmp.eq.s32.totalorder %s18, 0
    %p81 = por %p79, %p80
    %p82 = scmp.ne.s32.totalorder %s70, %s71
    %p83 = scmp.eq.s32.totalorder %s19, 1
    %p84 = por %p82, %p83
    %p86 = scmp.ne.s32.totalorder %s71, %s85
    %p87 = scmp.eq.s32.totalorder %s19, 0
    %p88 = por %p86, %p87
    %s90 = sadd.s32 %s89, 1
    %p93 = scmp.eq.s32.totalorder %s13, 1
    %p94 = scmp.ne.s32.totalorder %s89, %s91
    %p95 = scmp.eq.s32.totalorder %s13, 0
    %p96 = por %p94, %p95
    %p97 = scmp.ne.s32.totalorder %s89, %s91
    %p98 = scmp.eq.s32.totalorder %s18, 1
    %p99 = por %p97, %p98
    %p100 = scmp.ne.s32.totalorder %s91, %s92
    %p101 = scmp.eq.s32.totalorder %s18, 0
    %p102 = por %p100, %p101
    %p103 = scmp.ne.s32.totalorder %s91, %s92
    %p104 = scmp.eq.s32.totalorder %s19, 1
    %p105 = por %p103, %p104
    %p107 = scmp.ne.s32.totalorder %s92, %s106
    %p108 = scmp.eq.s32.totalorder %s19, 0
    %p109 = por %p107, %p108
    %s111 = sadd.s32 %s110, 1
    %p114 = scmp.eq.s32.totalorder %s13, 1
    %p115 = scmp.ne.s32.totalorder %s110, %s112
    %p116 = scmp.eq.s32.totalorder %s13, 0
    %p117 = por %p115, %p116
    %p118 = scmp.ne.s32.totalorder %s110, %s112
    %p119 = scmp.eq.s32.totalorder %s18, 1
    %p120 = por %p118, %p119
    %p121 = scmp.ne.s32.totalorder %s112, %s113
    %p122 = scmp.eq.s32.totalorder %s18, 0
    %p123 = por %p121, %p122
    %p124 = scmp.ne.s32.totalorder %s112, %s113
    %p125 = scmp.eq.s32.totalorder %s19, 1
    %p126 = por %p124, %p125
    %p128 = scmp.ne.s32.totalorder %s113, %s127
    %p129 = scmp.eq.s32.totalorder %s19, 0
    %p130 = por %p128, %p129
    %s132 = sadd.s32 %s131, 1
    %p135 = scmp.eq.s32.totalorder %s13, 1
    %p136 = scmp.ne.s32.totalorder %s131, %s133
    %p137 = scmp.eq.s32.totalorder %s13, 0
    %p138 = por %p136, %p137
    %p139 = scmp.ne.s32.totalorder %s131, %s133
    %p140 = scmp.eq.s32.totalorder %s18, 1
    %p141 = por %p139, %p140
    %p142 = scmp.ne.s32.totalorder %s133, %s134
    %p143 = scmp.eq.s32.totalorder %s18, 0
    %p144 = por %p142, %p143
    %p145 = scmp.ne.s32.totalorder %s133, %s134
    %p146 = scmp.eq.s32.totalorder %s19, 1
    %p147 = por %p145, %p146
    %p149 = scmp.ne.s32.totalorder %s134, %s148
    %p150 = scmp.eq.s32.totalorder %s19, 0
    %p151 = por %p149, %p150
    %s153 = sadd.s32 %s152, 1
    %p156 = scmp.eq.s32.totalorder %s13, 1
    %p157 = scmp.ne.s32.totalorder %s152, %s154
    %p158 = scmp.eq.s32.totalorder %s13, 0
    %p159 = por %p157, %p158
    %p160 = scmp.ne.s32.totalorder %s152, %s154
    %p161 = scmp.eq.s32.totalorder %s18, 1
    %p162 = por %p160, %p161
    %p163 = scmp.ne.s32.totalorder %s154, %s155
    %p164 = scmp.eq.s32.totalorder %s18, 0
    %p165 = por %p163, %p164
    %p166 = scmp.ne.s32.totalorder %s154, %s155
    %p167 = scmp.eq.s32.totalorder %s19, 1
    %p168 = por %p166, %p167
    %p170 = scmp.ne.s32.totalorder %s155, %s169
    %p171 = scmp.eq.s32.totalorder %s19, 0
    %p172 = por %p170, %p171
    %s173 = ssub.s32 %s13, %s20
    %p174 = scmp.eq.s32.totalorder %s173, 0
    %s176 = sadd.s32 %s175, 1
    %s177 = scalar_select %p174, %s175, %s176
    %p180 = pneg %p174
    %p181 = scmp.eq.s32.totalorder %s13, 1
    %p182 = por %p180, %p181
    %p183 = scmp.ne.s32.totalorder %s175, %s178
    %p184 = scmp.eq.s32.totalorder %s13, 0
    %p185 = por %p183, %p184
    %p186 = scmp.ne.s32.totalorder %s175, %s178
    %p187 = scmp.eq.s32.totalorder %s18, 1
    %p188 = por %p186, %p187
    %p189 = scmp.ne.s32.totalorder %s178, %s179
    %p190 = scmp.eq.s32.totalorder %s18, 0
    %p191 = por %p189, %p190
    %p192 = scmp.ne.s32.totalorder %s178, %s179
    %p193 = scmp.eq.s32.totalorder %s19, 1
    %p194 = por %p192, %p193
    %p196 = scmp.ne.s32.totalorder %s179, %s195
    %p197 = scmp.eq.s32.totalorder %s19, 0
    %p198 = por %p196, %p197
    %p199 = scmp.le.s32.totalorder 1, %s13
    %p200 = scmp.lt.s32.totalorder %s13, 3
    %p201 = pnand %p199, %p200
    %p202 = pneg %p201
    // Predicated region
    $region9: #{transformer_forward.8} parent=5 // pred_check
      _
    $region10: #{transformer_forward.8} parent=5 // pred_check_branch
      %204 = sbr.rel (%p201) target = $region12
    $region11: #{transformer_forward.8} parent=5 // pred_region
      %s205 = ssub.s32 %s13, 1
      // Predicated region
      $region13: #{transformer_forward.8} parent=11 // pred_check
        %p206 = pneg %p60
      $region14: #{transformer_forward.8} parent=11 // pred_check_branch
        %208 = sbr.rel (%p206) target = $region16
      $region15: #{transformer_forward.8} parent=11 // pred_region
        _
      $region16: #{transformer_forward.8} parent=11 // pred_fallthru
        _
      // Predicated region
      $region17: #{transformer_forward.8} parent=11 // pred_check
        %p209 = pneg %p81
      $region18: #{transformer_forward.8} parent=11 // pred_check_branch
        %211 = sbr.rel (%p209) target = $region20
      $region19: #{transformer_forward.8} parent=11 // pred_region
        _
      $region20: #{transformer_forward.8} parent=11 // pred_fallthru
        _
      // Predicated region
      $region21: #{transformer_forward.8} parent=11 // pred_check
        %p212 = pneg %p102
      $region22: #{transformer_forward.8} parent=11 // pred_check_branch
        %214 = sbr.rel (%p212) target = $region24
      $region23: #{transformer_forward.8} parent=11 // pred_region
        _
      $region24: #{transformer_forward.8} parent=11 // pred_fallthru
        _
      // Predicated region
      $region25: #{transformer_forward.8} parent=11 // pred_check
        %p215 = pneg %p123
      $region26: #{transformer_forward.8} parent=11 // pred_check_branch
        %217 = sbr.rel (%p215) target = $region28
      $region27: #{transformer_forward.8} parent=11 // pred_region
        _
      $region28: #{transformer_forward.8} parent=11 // pred_fallthru
        _
      // Predicated region
      $region29: #{transformer_forward.8} parent=11 // pred_check
        %p218 = pneg %p144
      $region30: #{transformer_forward.8} parent=11 // pred_check_branch
        %220 = sbr.rel (%p218) target = $region32
      $region31: #{transformer_forward.8} parent=11 // pred_region
        _
      $region32: #{transformer_forward.8} parent=11 // pred_fallthru
        _
      // Predicated region
      $region33: #{transformer_forward.8} parent=11 // pred_check
        %p221 = pneg %p165
      $region34: #{transformer_forward.8} parent=11 // pred_check_branch
        %223 = sbr.rel (%p221) target = $region36
      $region35: #{transformer_forward.8} parent=11 // pred_region
        _
      $region36: #{transformer_forward.8} parent=11 // pred_fallthru
        _
    $region12: #{transformer_forward.8} parent=5 // pred_fallthru
      _
    %p224 = scmp.lt.s32.totalorder %s13, 2
    // Predicated region
    $region37: #{transformer_forward.8} parent=5 // pred_check
      %p225 = pneg %p224
    $region38: #{transformer_forward.8} parent=5 // pred_check_branch
      %227 = sbr.rel (%p225) target = $region40
    $region39: #{transformer_forward.8} parent=5 // pred_region
      // Predicated region
      $region41: #{transformer_forward.8} parent=39 // pred_check
        %p228 = pneg %p33
      $region42: #{transformer_forward.8} parent=39 // pred_check_branch
        %230 = sbr.rel (%p228) target = $region44
      $region43: #{transformer_forward.8} parent=39 // pred_region
        %p231 = scmp.lt.s32.totalorder %s13, 1
        %s232 = scalar_select %p231, %s13, 1
        %s233 = smul.addr %s232, 4
        %s234 = scalar_lea.vmem %s0, %s233
      $region44: #{transformer_forward.8} parent=39 // pred_fallthru
        _
    $region40: #{transformer_forward.8} parent=5 // pred_fallthru
      _
    %p235 = scmp.le.s32.totalorder 1, %s13
    %p236 = scmp.lt.s32.totalorder %s13, 3
    %p237 = pnand %p235, %p236
    %p238 = pneg %p237
    // Predicated region
    $region45: #{transformer_forward.8} parent=5 // pred_check
      _
    $region46: #{transformer_forward.8} parent=5 // pred_check_branch
      %240 = sbr.rel (%p237) target = $region48
    $region47: #{transformer_forward.8} parent=5 // pred_region
      %s241 = ssub.s32 %s13, 1
      %p242 = scmp.lt.s32.totalorder %s18, 1
      %s243 = scalar_select %p242, %s18, 1
      %s244 = smul.addr %s243, 4
      %s245 = scalar_lea.vmem %s0, %s244
      %p246 = pneg %p39
      %p247 = pneg %p36
      %p248 = pneg %p60
      %p249 = pneg %p57
      %p250 = pneg %p81
      %p251 = pneg %p78
      %p252 = pneg %p102
      %p253 = pneg %p99
      %p254 = pneg %p123
      %p255 = pneg %p120
      %p256 = pneg %p144
      %p257 = pneg %p141
      %p258 = pneg %p165
      %p259 = pneg %p162
      %p260 = pneg %p191
      %p261 = pneg %p188
      %p262 = scmp.lt.s32.totalorder %s18, 1
      %s263 = scalar_select %p262, %s18, 1
      %s264 = smul.addr %s263, 4
      %s265 = scalar_lea.vmem %s7, %s264
      %p266 = scmp.lt.s32.totalorder %s18, 1
      %s267 = scalar_select %p266, %s18, 1
      %s268 = smul.addr %s267, 4
      %s269 = scalar_lea.vmem %s0, %s268
      %p270 = scmp.lt.s32.totalorder %s18, 1
      %s271 = scalar_select %p270, %s18, 1
      %s272 = smul.addr %s271, 4
      %s273 = scalar_lea.vmem %s7, %s272
      %v275 = vld [vmem:[%s269] sm:$0xf]
      %v276 = vld [vmem:[%s1] sm:$0xf]
      %v277 = vld [vmem:[%s1 + $0x4] sm:$0xf]
      %v278 = vld [vmem:[%s1 + $0x8] sm:$0xf]
      %v279 = vld [vmem:[%s1 + $0xc] sm:$0xf]
      %v280 = vld [vmem:[%s2] sm:$0x1]
      %v282 = vperm.slane %v280, 0
      %v288 = vunpack.c.l.b16 %v276
      %v289 = vunpack.c.l.b16 %v277
      %v290 = vunpack.c.l.b16 %v278
      %v291 = vunpack.c.l.b16 %v279
      %v292 = vpack.c.b16 %v289, %v288
      %v293 = vpack.c.b16 %v291, %v290
      %vm296 = vcmask 261120
      %v298 = vsel %vm296, %v275, 0
      %300 = vmatpush.bf16.msra.mxu0 0
      %301 = vmatpush.bf16.msra.mxu0 0
      %302 = vmatpush.bf16.msra.mxu0 0
      %303 = vmatpush.bf16.msra.mxu0 0
      %304 = vmatpush.bf16.msra.mxu0 0
      %305 = vmatpush.bf16.msra.mxu0 0
      %306 = vmatpush.bf16.msra.mxu0 %v293
      %307 = vmatpush.bf16.msra.mxu0 %v292
      %308 = vmatmul.bf16.gmra.mxu0 %v298
      %v309 = vpop.f32.mrf.mxu0
      %v310 = vadd.f32 %v282, %v309
      %v311 = vpop.f32.mrf.mxu0
      %312 = vdwg.mxu0
      %v313 = vmax.f32 %v310, 0.0
      %v314 = vpack.c.bf16 %v313, %v313
      %v315 = vld [vmem:[%s3] sm:$0xf]
      %v316 = vld [vmem:[%s3 + $0x4] sm:$0xf]
      %v317 = vld [vmem:[%s3 + $0x8] sm:$0xf]
      %v318 = vld [vmem:[%s3 + $0xc] sm:$0xf]
      %v319 = vld [vmem:[%s3 + $0x10] sm:$0xf]
      %v320 = vld [vmem:[%s3 + $0x14] sm:$0xf]
      %v321 = vld [vmem:[%s3 + $0x18] sm:$0xf]
      %v322 = vld [vmem:[%s3 + $0x1c] sm:$0xf]
      %v323 = vld [vmem:[%s4] sm:$0x1]
      %v325 = vperm.slane %v323, 0
      %v335 = vunpack.c.l.b16 %v315
      %v336 = vunpack.c.l.b16 %v316
      %v337 = vunpack.c.l.b16 %v317
      %v338 = vunpack.c.l.b16 %v318
      %v339 = vunpack.c.l.b16 %v319
      %v340 = vunpack.c.l.b16 %v320
      %v341 = vunpack.c.l.b16 %v321
      %v342 = vunpack.c.l.b16 %v322
      %v343 = vpack.c.b16 %v336, %v335
      %v344 = vpack.c.b16 %v338, %v337
      %v345 = vpack.c.b16 %v340, %v339
      %v346 = vpack.c.b16 %v342, %v341
      %vm351 = vcmask 523264
      %v353 = vsel %vm351, %v314, 0
      %355 = vmatpush.bf16.msra.mxu0 0
      %356 = vmatpush.bf16.msra.mxu0 0
      %357 = vmatpush.bf16.msra.mxu0 0
      %358 = vmatpush.bf16.msra.mxu0 0
      %359 = vmatpush.bf16.msra.mxu0 %v346
      %360 = vmatpush.bf16.msra.mxu0 %v345
      %361 = vmatpush.bf16.msra.mxu0 %v344
      %362 = vmatpush.bf16.msra.mxu0 %v343
      %363 = vmatmul.bf16.gmra.mxu0 %v353
      %v364 = vpop.f32.mrf.mxu0
      %v365 = vadd.f32 %v325, %v364
      %v366 = vpop.f32.mrf.mxu0
      %367 = vdwg.mxu0
      %v368 = vunpack.c.l.bf16 %v275
      %v369 = vadd.f32 %v365, %v368
      %v370 = vld [vmem:[%s5] sm:$0x1]
      %v371 = vld [vmem:[%s6] sm:$0x1]
      %v372 = vsel %vm296, %v369, 0.0
      %373 = vadd.xlane.f32.xlu0 %v372
      %v374 = vpop.xlane.xlu0 %373
      %v375 = vrcp.pop 32.0
      %v376 = vmul.f32 32.0, %v375
      %v377 = vsub.f32 1.0, %v376
      %v378 = vmul.f32 %v375, %v377
      %v379 = vadd.f32 %v375, %v378
      %vm380 = vweird.f32 %v375
      %v381 = vsel %vm380, %v375, %v379
      %v382 = vmul.f32 %v374, %v381
      %v383 = vsub.f32 %v369, %v382
      %v384 = vmul.f32 %v383, %v383
      %v385 = vsel %vm296, %v384, 0.0
      %386 = vadd.xlane.f32.xlu0 %v385
      %v387 = vpop.xlane.xlu0 %386
      %v388 = vmul.f32 %v387, %v381
      %v389 = vadd.f32 %v388, 1e-05
      %v390 = vrsqrt.pop %v389
      %v391 = vmul.f32 %v390, %v389
      %v392 = vmul.f32 %v391, %v390
      %v393 = vmul.f32 0.5, %v392
      %v394 = vsub.f32 1.5, %v393
      %v395 = vmul.f32 %v390, %v394
      %vm396 = vweird.f32 %v389
      %vm397 = vweird.f32 %v390
      %vm398 = vmor %vm396, %vm397
      %v399 = vsel %vm398, %v390, %v395
      %v400 = vmul.f32 %v383, %v399
      %v402 = vperm.slane %v370, 0
      %v404 = vmul.f32 %v400, %v402
      %v406 = vperm.slane %v371, 0
      %v408 = vadd.f32 %v404, %v406
      %v409 = vpack.c.bf16 %v408, %v408
      %vm410 = vcmask 257024
      %411 = vst.msk [vmem:[%s273] sm:$0xf] %vm410, %v409
      %p412 = scmp.lt.s32.totalorder %s18, 1
      %s413 = scalar_select %p412, %s18, 1
      %s414 = smul.addr %s413, 4
      %s415 = scalar_lea.vmem %s7, %s414
      // Predicated region
      $region49: #{transformer_forward.8} parent=47 // pred_check
        %p416 = pneg %p188
      $region50: #{transformer_forward.8} parent=47 // pred_check_branch
        %418 = sbr.rel (%p416) target = $region52
      $region51: #{transformer_forward.8} parent=47 // pred_region
        _
      $region52: #{transformer_forward.8} parent=47 // pred_fallthru
        _
    $region48: #{transformer_forward.8} parent=5 // pred_fallthru
      _
    %p419 = scmp.le.s32.totalorder 2, %s13
    // Predicated region
    $region53: #{transformer_forward.8} parent=5 // pred_check
      %p420 = pneg %p419
    $region54: #{transformer_forward.8} parent=5 // pred_check_branch
      %422 = sbr.rel (%p420) target = $region56
    $region55: #{transformer_forward.8} parent=5 // pred_region
      %s423 = ssub.s32 %s13, 2
      // Predicated region
      $region57: #{transformer_forward.8} parent=55 // pred_check
        %p424 = pneg %p194
      $region58: #{transformer_forward.8} parent=55 // pred_check_branch
        %426 = sbr.rel (%p424) target = $region60
      $region59: #{transformer_forward.8} parent=55 // pred_region
        %p427 = scmp.lt.s32.totalorder %s19, 1
        %s428 = scalar_select %p427, %s19, 1
        %s429 = smul.addr %s428, 4
        %s430 = scalar_lea.vmem %s7, %s429
      $region60: #{transformer_forward.8} parent=55 // pred_fallthru
        _
    $region56: #{transformer_forward.8} parent=5 // pred_fallthru
      _
  $region6: #{transformer_forward.8} parent=0 // loop_footer
    %s17 = sadd.s32 1, %s13
  $region7: #{transformer_forward.8} parent=0 // loop_footer_branch
    %12 = sbr.rel target = $region3
  $region8: #{transformer_forward.8} parent=0 // loop_exit
    _

</llo_original>
